<compile_context>
chip_gen: v7x
topology: tpu7x:2x2x1
jax: 0.10.0
libtpu: 0.0.40
codegen_flags: <defaults>
</compile_context>

<pallas_src>
import jax
import jax.numpy as jnp
from jax.experimental import pallas as pl
from jax.experimental.pallas import tpu as pltpu

CB = 512     # channel tile per grid step (4 x 128 lanes) -> grid of 2 for 960->1024 channels
HALF = 256   # in-kernel lane-half so the register accumulator stays at ~14 vregs


def _dw_conv3x3_s2_kernel(xw0_ref, xw1_ref, w_ref, o_ref):
    # xw{pw}_ref : (Hp//2, 2, Wp//2, CB)  stride-2 W-phase pw of the zero-padded input,
    #              both H-phases kept in dim 1 (selected with a free static index).
    # w_ref      : (9, CB)   flattened 3x3 taps, one sublane row per tap
    # o_ref      : (H_out, W_out, CB)
    h_out, w_out, cb = o_ref.shape
    xw = (xw0_ref, xw1_ref)
    for c0 in range(0, cb, HALF):                       # 2 lane-halves -> low vreg pressure
        acc = jnp.zeros((h_out, w_out, HALF), jnp.float32)
        for kh in range(3):
            for kw in range(3):
                # output[oh, ow] needs x_pad[2*oh + kh, 2*ow + kw]
                #   -> W-phase kw%2, H-phase kh%2, rows oh + kh//2, cols ow + kw//2
                xr = xw[kw % 2]
                patch = xr[(kh // 2):(kh // 2) + h_out,
                           kh % 2,
                           (kw // 2):(kw // 2) + w_out,
                           c0:c0 + HALF]                                   # (H_out, W_out, HALF)
                k = kh * 3 + kw
                tap = w_ref[k:k + 1, c0:c0 + HALF]                         # (1, HALF)
                acc = acc + patch.astype(jnp.float32) * tap[None].astype(jnp.float32)
        o_ref[:, :, c0:c0 + HALF] = acc.astype(o_ref.dtype)


def depthwise_conv3x3_s2_p1(x_nchw, weight):
    """Equivalent of nn.Conv2d(C, C, 3, stride=2, padding=1, groups=C, bias=False).

    x_nchw : (1, C, H, W) float32
    weight : (C, 1, 3, 3) float32 (PyTorch depthwise OIHW layout)
    returns: (1, C, H_out, W_out) float32
    """
    n, c, h, w = x_nchw.shape
    assert n == 1
    hp, wp = h + 2, w + 2                          # padded spatial (pad=1 each side)
    assert hp % 2 == 0 and wp % 2 == 0             # phase split needs even padded dims
    h_out = (h + 2 - 3) // 2 + 1
    w_out = (w + 2 - 3) // 2 + 1
    c_pad = ((c + CB - 1) // CB) * CB
    hp2, wp2 = hp // 2, wp // 2
    n_cb = c_pad // CB
    assert c_pad % CB == 0 and CB % HALF == 0

    # --- glue (layout only): NCHW -> channels-last, zero pad spatial + channels ---
    x = jnp.transpose(x_nchw[0], (1, 2, 0))                       # (H, W, C)
    x = jnp.pad(x, ((1, 1), (1, 1), (0, c_pad - c)))              # (Hp, Wp, Cp)
    # FREE row-major reshape: (Hp, Wp, Cp) -> (Hp//2, 2, Wp//2, 2*Cp)
    #   element (h, w, ch) -> (h//2, h%2, w//2, (w%2)*Cp + ch)
    x4 = x.reshape(hp2, 2, wp2, 2 * c_pad)

    # weights: (C, 1, 3, 3) -> (9, Cp); each 3x3 tap becomes one sublane row
    wk = jnp.transpose(weight[:, 0], (1, 2, 0)).reshape(9, c)     # (9, C)
    wk = jnp.pad(wk, ((0, 0), (0, c_pad - c)))                    # (9, Cp)

    cost = pl.CostEstimate(
        flops=2 * 9 * c * h_out * w_out,
        transcendentals=0,
        bytes_accessed=(hp * wp * c_pad + 9 * c_pad + h_out * w_out * c_pad) * 4)

    out = pl.pallas_call(
        _dw_conv3x3_s2_kernel,
        out_shape=jax.ShapeDtypeStruct((h_out, w_out, c_pad), x_nchw.dtype),
        grid_spec=pltpu.PrefetchScalarGridSpec(
            num_scalar_prefetch=0,
            grid=(n_cb,),
            in_specs=[
                # one operand per W-phase; H-phases ride inside the block (dim 1)
                pl.BlockSpec((hp2, 2, wp2, CB), lambda ci: (0, 0, 0, ci)),
                pl.BlockSpec((hp2, 2, wp2, CB), lambda ci: (0, 0, 0, n_cb + ci)),
                pl.BlockSpec((9, CB), lambda ci: (0, ci)),
            ],
            out_specs=pl.BlockSpec((h_out, w_out, CB), lambda ci: (0, 0, ci)),
        ),
        compiler_params=pltpu.CompilerParams(
            dimension_semantics=("parallel",),
            allow_input_fusion=[True, True, True]),
        cost_estimate=cost,
    )(x4, x4, wk)

    out = out[:, :, :c]                                            # drop channel padding
    return jnp.transpose(out, (2, 0, 1))[None]                     # back to NCHW


if __name__ == "__main__":
    key = jax.random.PRNGKey(0)
    kx, kw = jax.random.split(key)

    C, H, W = 960, 14, 14                      # shapes implied by the module
    x304 = jax.random.normal(kx, (1, C, H, W), dtype=jnp.float32)
    # deterministic synthetic weights (PyTorch depthwise weight shape: (960, 1, 3, 3))
    weight = jax.random.normal(kw, (C, 1, 3, 3), dtype=jnp.float32) * 0.1

    y = jax.jit(depthwise_conv3x3_s2_p1)(x304, weight)
    y = jax.block_until_ready(y)

    # reference check against XLA's grouped conv
    y_ref = jax.lax.conv_general_dilated(
        x304, weight, window_strides=(2, 2), padding=((1, 1), (1, 1)),
        dimension_numbers=("NCHW", "OIHW", "NCHW"), feature_group_count=C)

    assert y.shape == (1, C, 7, 7), y.shape
    assert jnp.allclose(y, y_ref, rtol=1e-5, atol=1e-5), \
        float(jnp.max(jnp.abs(y - y_ref)))
    print("KERNEL_OK")
</pallas_src>

<mosaic_0001>
module attributes {stable_mosaic.version = 11 : i64} {
  func.func @_dw_conv3x3_s2_kernel(%arg0: i32, %arg1: memref<8x2x8x512xf32, #tpu.memory_space<vmem>>, %arg2: memref<8x2x8x512xf32, #tpu.memory_space<vmem>>, %arg3: memref<9x512xf32, #tpu.memory_space<vmem>>, %arg4: memref<7x7x512xf32, #tpu.memory_space<vmem>>) attributes {dimension_semantics = [#tpu.dimension_semantics<parallel>], iteration_bounds = array<i64: 2>, scalar_prefetch = 0 : i64, scratch_operands = 0 : i64, tpu.core_type = #tpu.core_type<tc>, window_params = [{transform_indices = @transform_0, window_bounds = array<i64: 8, 2, 8, 512>}, {transform_indices = @transform_1, window_bounds = array<i64: 8, 2, 8, 512>}, {transform_indices = @transform_2, window_bounds = array<i64: 9, 512>}, {transform_indices = @transform_3, window_bounds = array<i64: 7, 7, 512>}]} {
    %cst = arith.constant 0.000000e+00 : f32
    %0 = vector.broadcast %cst : f32 to vector<7x7x256xf32>
    %c0 = arith.constant 0 : index
    %c0_0 = arith.constant 0 : index
    %c0_1 = arith.constant 0 : index
    %c0_2 = arith.constant 0 : index
    %1 = vector.load %arg1[%c0, %c0_0, %c0_1, %c0_2] : memref<8x2x8x512xf32, #tpu.memory_space<vmem>>, vector<7x1x7x256xf32>
    %2 = vector.shape_cast %1 : vector<7x1x7x256xf32> to vector<7x7x256xf32>
    %c0_3 = arith.constant 0 : index
    %c0_4 = arith.constant 0 : index
    %3 = vector.load %arg3[%c0_3, %c0_4] : memref<9x512xf32, #tpu.memory_space<vmem>>, vector<1x256xf32>
    %4 = vector.shape_cast %3 : vector<1x256xf32> to vector<1x1x256xf32>
    %5 = vector.broadcast %4 : vector<1x1x256xf32> to vector<7x7x256xf32>
    %6 = arith.mulf %2, %5 : vector<7x7x256xf32>
    %7 = arith.addf %0, %6 : vector<7x7x256xf32>
    %c0_5 = arith.constant 0 : index
    %c0_6 = arith.constant 0 : index
    %c0_7 = arith.constant 0 : index
    %c0_8 = arith.constant 0 : index
    %8 = vector.load %arg2[%c0_5, %c0_6, %c0_7, %c0_8] : memref<8x2x8x512xf32, #tpu.memory_space<vmem>>, vector<7x1x7x256xf32>
    %9 = vector.shape_cast %8 : vector<7x1x7x256xf32> to vector<7x7x256xf32>
    %c1 = arith.constant 1 : index
    %c0_9 = arith.constant 0 : index
    %10 = vector.load %arg3[%c1, %c0_9] : memref<9x512xf32, #tpu.memory_space<vmem>>, vector<1x256xf32>
    %11 = vector.shape_cast %10 : vector<1x256xf32> to vector<1x1x256xf32>
    %12 = vector.broadcast %11 : vector<1x1x256xf32> to vector<7x7x256xf32>
    %13 = arith.mulf %9, %12 : vector<7x7x256xf32>
    %14 = arith.addf %7, %13 : vector<7x7x256xf32>
    %c0_10 = arith.constant 0 : index
    %c0_11 = arith.constant 0 : index
    %c1_12 = arith.constant 1 : index
    %c0_13 = arith.constant 0 : index
    %15 = vector.load %arg1[%c0_10, %c0_11, %c1_12, %c0_13] : memref<8x2x8x512xf32, #tpu.memory_space<vmem>>, vector<7x1x7x256xf32>
    %16 = vector.shape_cast %15 : vector<7x1x7x256xf32> to vector<7x7x256xf32>
    %c2 = arith.constant 2 : index
    %c0_14 = arith.constant 0 : index
    %17 = vector.load %arg3[%c2, %c0_14] : memref<9x512xf32, #tpu.memory_space<vmem>>, vector<1x256xf32>
    %18 = vector.shape_cast %17 : vector<1x256xf32> to vector<1x1x256xf32>
    %19 = vector.broadcast %18 : vector<1x1x256xf32> to vector<7x7x256xf32>
    %20 = arith.mulf %16, %19 : vector<7x7x256xf32>
    %21 = arith.addf %14, %20 : vector<7x7x256xf32>
    %c0_15 = arith.constant 0 : index
    %c1_16 = arith.constant 1 : index
    %c0_17 = arith.constant 0 : index
    %c0_18 = arith.constant 0 : index
    %22 = vector.load %arg1[%c0_15, %c1_16, %c0_17, %c0_18] : memref<8x2x8x512xf32, #tpu.memory_space<vmem>>, vector<7x1x7x256xf32>
    %23 = vector.shape_cast %22 : vector<7x1x7x256xf32> to vector<7x7x256xf32>
    %c3 = arith.constant 3 : index
    %c0_19 = arith.constant 0 : index
    %24 = vector.load %arg3[%c3, %c0_19] : memref<9x512xf32, #tpu.memory_space<vmem>>, vector<1x256xf32>
    %25 = vector.shape_cast %24 : vector<1x256xf32> to vector<1x1x256xf32>
    %26 = vector.broadcast %25 : vector<1x1x256xf32> to vector<7x7x256xf32>
    %27 = arith.mulf %23, %26 : vector<7x7x256xf32>
    %28 = arith.addf %21, %27 : vector<7x7x256xf32>
    %c0_20 = arith.constant 0 : index
    %c1_21 = arith.constant 1 : index
    %c0_22 = arith.constant 0 : index
    %c0_23 = arith.constant 0 : index
    %29 = vector.load %arg2[%c0_20, %c1_21, %c0_22, %c0_23] : memref<8x2x8x512xf32, #tpu.memory_space<vmem>>, vector<7x1x7x256xf32>
    %30 = vector.shape_cast %29 : vector<7x1x7x256xf32> to vector<7x7x256xf32>
    %c4 = arith.constant 4 : index
    %c0_24 = arith.constant 0 : index
    %31 = vector.load %arg3[%c4, %c0_24] : memref<9x512xf32, #tpu.memory_space<vmem>>, vector<1x256xf32>
    %32 = vector.shape_cast %31 : vector<1x256xf32> to vector<1x1x256xf32>
    %33 = vector.broadcast %32 : vector<1x1x256xf32> to vector<7x7x256xf32>
    %34 = arith.mulf %30, %33 : vector<7x7x256xf32>
    %35 = arith.addf %28, %34 : vector<7x7x256xf32>
    %c0_25 = arith.constant 0 : index
    %c1_26 = arith.constant 1 : index
    %c1_27 = arith.constant 1 : index
    %c0_28 = arith.constant 0 : index
    %36 = vector.load %arg1[%c0_25, %c1_26, %c1_27, %c0_28] : memref<8x2x8x512xf32, #tpu.memory_space<vmem>>, vector<7x1x7x256xf32>
    %37 = vector.shape_cast %36 : vector<7x1x7x256xf32> to vector<7x7x256xf32>
    %c5 = arith.constant 5 : index
    %c0_29 = arith.constant 0 : index
    %38 = vector.load %arg3[%c5, %c0_29] : memref<9x512xf32, #tpu.memory_space<vmem>>, vector<1x256xf32>
    %39 = vector.shape_cast %38 : vector<1x256xf32> to vector<1x1x256xf32>
    %40 = vector.broadcast %39 : vector<1x1x256xf32> to vector<7x7x256xf32>
    %41 = arith.mulf %37, %40 : vector<7x7x256xf32>
    %42 = arith.addf %35, %41 : vector<7x7x256xf32>
    %c1_30 = arith.constant 1 : index
    %c0_31 = arith.constant 0 : index
    %c0_32 = arith.constant 0 : index
    %c0_33 = arith.constant 0 : index
    %43 = vector.load %arg1[%c1_30, %c0_31, %c0_32, %c0_33] : memref<8x2x8x512xf32, #tpu.memory_space<vmem>>, vector<7x1x7x256xf32>
    %44 = vector.shape_cast %43 : vector<7x1x7x256xf32> to vector<7x7x256xf32>
    %c6 = arith.constant 6 : index
    %c0_34 = arith.constant 0 : index
    %45 = vector.load %arg3[%c6, %c0_34] : memref<9x512xf32, #tpu.memory_space<vmem>>, vector<1x256xf32>
    %46 = vector.shape_cast %45 : vector<1x256xf32> to vector<1x1x256xf32>
    %47 = vector.broadcast %46 : vector<1x1x256xf32> to vector<7x7x256xf32>
    %48 = arith.mulf %44, %47 : vector<7x7x256xf32>
    %49 = arith.addf %42, %48 : vector<7x7x256xf32>
    %c1_35 = arith.constant 1 : index
    %c0_36 = arith.constant 0 : index
    %c0_37 = arith.constant 0 : index
    %c0_38 = arith.constant 0 : index
    %50 = vector.load %arg2[%c1_35, %c0_36, %c0_37, %c0_38] : memref<8x2x8x512xf32, #tpu.memory_space<vmem>>, vector<7x1x7x256xf32>
    %51 = vector.shape_cast %50 : vector<7x1x7x256xf32> to vector<7x7x256xf32>
    %c7 = arith.constant 7 : index
    %c0_39 = arith.constant 0 : index
    %52 = vector.load %arg3[%c7, %c0_39] : memref<9x512xf32, #tpu.memory_space<vmem>>, vector<1x256xf32>
    %53 = vector.shape_cast %52 : vector<1x256xf32> to vector<1x1x256xf32>
    %54 = vector.broadcast %53 : vector<1x1x256xf32> to vector<7x7x256xf32>
    %55 = arith.mulf %51, %54 : vector<7x7x256xf32>
    %56 = arith.addf %49, %55 : vector<7x7x256xf32>
    %c1_40 = arith.constant 1 : index
    %c0_41 = arith.constant 0 : index
    %c1_42 = arith.constant 1 : index
    %c0_43 = arith.constant 0 : index
    %57 = vector.load %arg1[%c1_40, %c0_41, %c1_42, %c0_43] : memref<8x2x8x512xf32, #tpu.memory_space<vmem>>, vector<7x1x7x256xf32>
    %58 = vector.shape_cast %57 : vector<7x1x7x256xf32> to vector<7x7x256xf32>
    %c8 = arith.constant 8 : index
    %c0_44 = arith.constant 0 : index
    %59 = vector.load %arg3[%c8, %c0_44] : memref<9x512xf32, #tpu.memory_space<vmem>>, vector<1x256xf32>
    %60 = vector.shape_cast %59 : vector<1x256xf32> to vector<1x1x256xf32>
    %61 = vector.broadcast %60 : vector<1x1x256xf32> to vector<7x7x256xf32>
    %62 = arith.mulf %58, %61 : vector<7x7x256xf32>
    %63 = arith.addf %56, %62 : vector<7x7x256xf32>
    %c0_45 = arith.constant 0 : index
    %c0_46 = arith.constant 0 : index
    %c0_47 = arith.constant 0 : index
    %64 = vector.load %arg4[%c0_45, %c0_46, %c0_47] : memref<7x7x512xf32, #tpu.memory_space<vmem>>, vector<7x7x256xf32>
    tpu.vector_store %arg4[%c0_45, %c0_46, %c0_47], %63 {strides = array<i32>} : memref<7x7x512xf32, #tpu.memory_space<vmem>>, vector<7x7x256xf32>,
    %cst_48 = arith.constant 0.000000e+00 : f32
    %65 = vector.broadcast %cst_48 : f32 to vector<7x7x256xf32>
    %c0_49 = arith.constant 0 : index
    %c0_50 = arith.constant 0 : index
    %c0_51 = arith.constant 0 : index
    %c256 = arith.constant 256 : index
    %66 = vector.load %arg1[%c0_49, %c0_50, %c0_51, %c256] : memref<8x2x8x512xf32, #tpu.memory_space<vmem>>, vector<7x1x7x256xf32>
    %67 = vector.shape_cast %66 : vector<7x1x7x256xf32> to vector<7x7x256xf32>
    %c0_52 = arith.constant 0 : index
    %c256_53 = arith.constant 256 : index
    %68 = vector.load %arg3[%c0_52, %c256_53] : memref<9x512xf32, #tpu.memory_space<vmem>>, vector<1x256xf32>
    %69 = vector.shape_cast %68 : vector<1x256xf32> to vector<1x1x256xf32>
    %70 = vector.broadcast %69 : vector<1x1x256xf32> to vector<7x7x256xf32>
    %71 = arith.mulf %67, %70 : vector<7x7x256xf32>
    %72 = arith.addf %65, %71 : vector<7x7x256xf32>
    %c0_54 = arith.constant 0 : index
    %c0_55 = arith.constant 0 : index
    %c0_56 = arith.constant 0 : index
    %c256_57 = arith.constant 256 : index
    %73 = vector.load %arg2[%c0_54, %c0_55, %c0_56, %c256_57] : memref<8x2x8x512xf32, #tpu.memory_space<vmem>>, vector<7x1x7x256xf32>
    %74 = vector.shape_cast %73 : vector<7x1x7x256xf32> to vector<7x7x256xf32>
    %c1_58 = arith.constant 1 : index
    %c256_59 = arith.constant 256 : index
    %75 = vector.load %arg3[%c1_58, %c256_59] : memref<9x512xf32, #tpu.memory_space<vmem>>, vector<1x256xf32>
    %76 = vector.shape_cast %75 : vector<1x256xf32> to vector<1x1x256xf32>
    %77 = vector.broadcast %76 : vector<1x1x256xf32> to vector<7x7x256xf32>
    %78 = arith.mulf %74, %77 : vector<7x7x256xf32>
    %79 = arith.addf %72, %78 : vector<7x7x256xf32>
    %c0_60 = arith.constant 0 : index
    %c0_61 = arith.constant 0 : index
    %c1_62 = arith.constant 1 : index
    %c256_63 = arith.constant 256 : index
    %80 = vector.load %arg1[%c0_60, %c0_61, %c1_62, %c256_63] : memref<8x2x8x512xf32, #tpu.memory_space<vmem>>, vector<7x1x7x256xf32>
    %81 = vector.shape_cast %80 : vector<7x1x7x256xf32> to vector<7x7x256xf32>
    %c2_64 = arith.constant 2 : index
    %c256_65 = arith.constant 256 : index
    %82 = vector.load %arg3[%c2_64, %c256_65] : memref<9x512xf32, #tpu.memory_space<vmem>>, vector<1x256xf32>
    %83 = vector.shape_cast %82 : vector<1x256xf32> to vector<1x1x256xf32>
    %84 = vector.broadcast %83 : vector<1x1x256xf32> to vector<7x7x256xf32>
    %85 = arith.mulf %81, %84 : vector<7x7x256xf32>
    %86 = arith.addf %79, %85 : vector<7x7x256xf32>
    %c0_66 = arith.constant 0 : index
    %c1_67 = arith.constant 1 : index
    %c0_68 = arith.constant 0 : index
    %c256_69 = arith.constant 256 : index
    %87 = vector.load %arg1[%c0_66, %c1_67, %c0_68, %c256_69] : memref<8x2x8x512xf32, #tpu.memory_space<vmem>>, vector<7x1x7x256xf32>
    %88 = vector.shape_cast %87 : vector<7x1x7x256xf32> to vector<7x7x256xf32>
    %c3_70 = arith.constant 3 : index
    %c256_71 = arith.constant 256 : index
    %89 = vector.load %arg3[%c3_70, %c256_71] : memref<9x512xf32, #tpu.memory_space<vmem>>, vector<1x256xf32>
    %90 = vector.shape_cast %89 : vector<1x256xf32> to vector<1x1x256xf32>
    %91 = vector.broadcast %90 : vector<1x1x256xf32> to vector<7x7x256xf32>
    %92 = arith.mulf %88, %91 : vector<7x7x256xf32>
    %93 = arith.addf %86, %92 : vector<7x7x256xf32>
    %c0_72 = arith.constant 0 : index
    %c1_73 = arith.constant 1 : index
    %c0_74 = arith.constant 0 : index
    %c256_75 = arith.constant 256 : index
    %94 = vector.load %arg2[%c0_72, %c1_73, %c0_74, %c256_75] : memref<8x2x8x512xf32, #tpu.memory_space<vmem>>, vector<7x1x7x256xf32>
    %95 = vector.shape_cast %94 : vector<7x1x7x256xf32> to vector<7x7x256xf32>
    %c4_76 = arith.constant 4 : index
    %c256_77 = arith.constant 256 : index
    %96 = vector.load %arg3[%c4_76, %c256_77] : memref<9x512xf32, #tpu.memory_space<vmem>>, vector<1x256xf32>
    %97 = vector.shape_cast %96 : vector<1x256xf32> to vector<1x1x256xf32>
    %98 = vector.broadcast %97 : vector<1x1x256xf32> to vector<7x7x256xf32>
    %99 = arith.mulf %95, %98 : vector<7x7x256xf32>
    %100 = arith.addf %93, %99 : vector<7x7x256xf32>
    %c0_78 = arith.constant 0 : index
    %c1_79 = arith.constant 1 : index
    %c1_80 = arith.constant 1 : index
    %c256_81 = arith.constant 256 : index
    %101 = vector.load %arg1[%c0_78, %c1_79, %c1_80, %c256_81] : memref<8x2x8x512xf32, #tpu.memory_space<vmem>>, vector<7x1x7x256xf32>
    %102 = vector.shape_cast %101 : vector<7x1x7x256xf32> to vector<7x7x256xf32>
    %c5_82 = arith.constant 5 : index
    %c256_83 = arith.constant 256 : index
    %103 = vector.load %arg3[%c5_82, %c256_83] : memref<9x512xf32, #tpu.memory_space<vmem>>, vector<1x256xf32>
    %104 = vector.shape_cast %103 : vector<1x256xf32> to vector<1x1x256xf32>
    %105 = vector.broadcast %104 : vector<1x1x256xf32> to vector<7x7x256xf32>
    %106 = arith.mulf %102, %105 : vector<7x7x256xf32>
    %107 = arith.addf %100, %106 : vector<7x7x256xf32>
    %c1_84 = arith.constant 1 : index
    %c0_85 = arith.constant 0 : index
    %c0_86 = arith.constant 0 : index
    %c256_87 = arith.constant 256 : index
    %108 = vector.load %arg1[%c1_84, %c0_85, %c0_86, %c256_87] : memref<8x2x8x512xf32, #tpu.memory_space<vmem>>, vector<7x1x7x256xf32>
    %109 = vector.shape_cast %108 : vector<7x1x7x256xf32> to vector<7x7x256xf32>
    %c6_88 = arith.constant 6 : index
    %c256_89 = arith.constant 256 : index
    %110 = vector.load %arg3[%c6_88, %c256_89] : memref<9x512xf32, #tpu.memory_space<vmem>>, vector<1x256xf32>
    %111 = vector.shape_cast %110 : vector<1x256xf32> to vector<1x1x256xf32>
    %112 = vector.broadcast %111 : vector<1x1x256xf32> to vector<7x7x256xf32>
    %113 = arith.mulf %109, %112 : vector<7x7x256xf32>
    %114 = arith.addf %107, %113 : vector<7x7x256xf32>
    %c1_90 = arith.constant 1 : index
    %c0_91 = arith.constant 0 : index
    %c0_92 = arith.constant 0 : index
    %c256_93 = arith.constant 256 : index
    %115 = vector.load %arg2[%c1_90, %c0_91, %c0_92, %c256_93] : memref<8x2x8x512xf32, #tpu.memory_space<vmem>>, vector<7x1x7x256xf32>
    %116 = vector.shape_cast %115 : vector<7x1x7x256xf32> to vector<7x7x256xf32>
    %c7_94 = arith.constant 7 : index
    %c256_95 = arith.constant 256 : index
    %117 = vector.load %arg3[%c7_94, %c256_95] : memref<9x512xf32, #tpu.memory_space<vmem>>, vector<1x256xf32>
    %118 = vector.shape_cast %117 : vector<1x256xf32> to vector<1x1x256xf32>
    %119 = vector.broadcast %118 : vector<1x1x256xf32> to vector<7x7x256xf32>
    %120 = arith.mulf %116, %119 : vector<7x7x256xf32>
    %121 = arith.addf %114, %120 : vector<7x7x256xf32>
    %c1_96 = arith.constant 1 : index
    %c0_97 = arith.constant 0 : index
    %c1_98 = arith.constant 1 : index
    %c256_99 = arith.constant 256 : index
    %122 = vector.load %arg1[%c1_96, %c0_97, %c1_98, %c256_99] : memref<8x2x8x512xf32, #tpu.memory_space<vmem>>, vector<7x1x7x256xf32>
    %123 = vector.shape_cast %122 : vector<7x1x7x256xf32> to vector<7x7x256xf32>
    %c8_100 = arith.constant 8 : index
    %c256_101 = arith.constant 256 : index
    %124 = vector.load %arg3[%c8_100, %c256_101] : memref<9x512xf32, #tpu.memory_space<vmem>>, vector<1x256xf32>
    %125 = vector.shape_cast %124 : vector<1x256xf32> to vector<1x1x256xf32>
    %126 = vector.broadcast %125 : vector<1x1x256xf32> to vector<7x7x256xf32>
    %127 = arith.mulf %123, %126 : vector<7x7x256xf32>
    %128 = arith.addf %121, %127 : vector<7x7x256xf32>
    %c0_102 = arith.constant 0 : index
    %c0_103 = arith.constant 0 : index
    %c256_104 = arith.constant 256 : index
    %129 = vector.load %arg4[%c0_102, %c0_103, %c256_104] : memref<7x7x512xf32, #tpu.memory_space<vmem>>, vector<7x7x256xf32>
    tpu.vector_store %arg4[%c0_102, %c0_103, %c256_104], %128 {strides = array<i32>} : memref<7x7x512xf32, #tpu.memory_space<vmem>>, vector<7x7x256xf32>,
    return
  }
  func.func @transform_0(%arg0: i32) -> (i32, i32, i32, i32) {
    %c0_i32 = arith.constant 0 : i32
    %c0_i32_0 = arith.constant 0 : i32
    %c0_i32_1 = arith.constant 0 : i32
    %c0_i32_2 = arith.constant 0 : i32
    return %c0_i32, %c0_i32_0, %c0_i32_1, %arg0 : i32, i32, i32, i32
  }
  func.func @transform_1(%arg0: i32) -> (i32, i32, i32, i32) {
    %c2_i32 = arith.constant 2 : i32
    %0 = arith.addi %c2_i32, %arg0 : i32
    %c0_i32 = arith.constant 0 : i32
    %c0_i32_0 = arith.constant 0 : i32
    %c0_i32_1 = arith.constant 0 : i32
    %c0_i32_2 = arith.constant 0 : i32
    return %c0_i32, %c0_i32_0, %c0_i32_1, %0 : i32, i32, i32, i32
  }
  func.func @transform_2(%arg0: i32) -> (i32, i32) {
    %c0_i32 = arith.constant 0 : i32
    %c0_i32_0 = arith.constant 0 : i32
    return %c0_i32, %arg0 : i32, i32
  }
  func.func @transform_3(%arg0: i32) -> (i32, i32, i32) {
    %c0_i32 = arith.constant 0 : i32
    %c0_i32_0 = arith.constant 0 : i32
    %c0_i32_1 = arith.constant 0 : i32
    return %c0_i32, %c0_i32_0, %arg0 : i32, i32, i32
  }
}

</mosaic_0001>

<llo_original>
// kernel: depthwise_conv3x3_s2_p1.2
$region0: #{depthwise_conv3x3_s2_p1.2}
  #allocation0 [shape = 'u32[]', space=smem, size = 0x4, offset = 0x4, fixed_abs, tag = 'smem constant byte address 0x4 - core index']
  #allocation1 [shape = 'u32[144,128]{1,0:T(1,128)}', space=vmem, size = 0x12000, scoped, tag = 'internal scratch']
  #allocation2 [shape = 'u32[2048]{0}', space=vmem, size = 0x2000, scoped, tag = 'scoped memory for depthwise_conv3x3_s2_p1.2']
  #allocation3 [shape = 'u32[2048]{0}', space=vmem, size = 0x2000, scoped, tag = 'scoped memory for depthwise_conv3x3_s2_p1.2']
  #allocation4 [shape = 'u32[2048]{0}', space=vmem, size = 0x2000, scoped, tag = 'scoped memory for depthwise_conv3x3_s2_p1.2']
  #allocation5 [shape = 'u32[2048]{0}', space=vmem, size = 0x2000, scoped, tag = 'scoped memory for depthwise_conv3x3_s2_p1.2']
  #allocation6 [shape = 'u32[2048]{0}', space=vmem, size = 0x2000, scoped, tag = 'scoped memory for depthwise_conv3x3_s2_p1.2']
  %s0 = inlined_call_operand.vmem [shape: f32[8,2,8,2048], index: 0, kind: input, shape index: {}]
  %s1 = inlined_call_operand.vmem [shape: f32[9,960], index: 1, kind: input, shape index: {}]
  %s2 = inlined_call_operand.<no memory space> [shape: f32[], index: 2, kind: input, shape index: {}]
  %s3 = inlined_call_operand.vmem [shape: f32[7,7,1024], index: 3, kind: output, shape index: {}]
  %s4 = sld [smem:[#allocation0]]
  $region110: #{depthwise_conv3x3_s2_p1.2} parent=0
    _
  %s6 = ssub.s32 1, %s4
  %s7 = scalar_select 0, %s6, %s4
  %v8 = vstv %s2
  $region1: #{depthwise_conv3x3_s2_p1.2} parent=0
    #allocation7 [shape = 'u8[524288]{0}', space=vmem, size = 0x80000, scoped, tag = 'input window, operand 1']
    #allocation8 [shape = 'u8[524288]{0}', space=vmem, size = 0x80000, scoped, tag = 'input window, operand 1']
    #allocation9 [shape = 'u8[229376]{0}', space=vmem, size = 0x38000, scoped, tag = 'output window, operand 0']
    loop: start=0, step=1, limit=4
    $region2: #{depthwise_conv3x3_s2_p1.2} parent=1 // loop_pre_header
      _
    $region3: #{depthwise_conv3x3_s2_p1.2} parent=1 // loop_header
      %s10 = sphi 0, %s14
      %p11 = scmp.ge.s32.totalorder %s10, 4
      %s20 = sphi 0, %s22
      %s23 = sphi 0, %s20
      %s24 = sphi 0, %s23
      %s40 = sphi 0, %s24
      %s48 = sphi 0, %s50
      %s51 = sphi 0, %s48
      %s52 = sphi 0, %s51
      %s68 = sphi 0, %s52
      %s74 = sphi 0, %s76
      %s77 = sphi 0, %s74
      %s78 = sphi 0, %s77
      %s94 = sphi 0, %s78
      %s100 = sphi 0, %s102
      %s103 = sphi 0, %s100
      %s104 = sphi 0, %s103
      %s120 = sphi 0, %s104
    $region4: #{depthwise_conv3x3_s2_p1.2} parent=1 // loop_header_branch
      %13 = sbr.rel (%p11) target = $region8
    $region5: #{depthwise_conv3x3_s2_p1.2} parent=1 // loop_body
      %s15 = ssub.s32 %s10, 1
      %s16 = ssub.s32 %s10, 2
      %s17 = sadd.s32 %s10, 1
      %s18 = ssub.s32 %s10, %s17
      %p19 = scmp.eq.s32.totalorder %s18, 0
      %s21 = sadd.s32 %s20, 1
      %s22 = scalar_select %p19, %s20, %s21
      %p25 = pneg %p19
      %p26 = scmp.eq.s32.totalorder %s10, 1
      %p27 = por %p25, %p26
      %p28 = scmp.ne.s32.totalorder %s20, %s23
      %p29 = scmp.eq.s32.totalorder %s10, 0
      %p30 = por %p28, %p29
      %p31 = scmp.ne.s32.totalorder %s20, %s23
      %p32 = scmp.eq.s32.totalorder %s15, 1
      %p33 = por %p31, %p32
      %p34 = scmp.ne.s32.totalorder %s23, %s24
      %p35 = scmp.eq.s32.totalorder %s15, 0
      %p36 = por %p34, %p35
      %p37 = scmp.ne.s32.totalorder %s23, %s24
      %p38 = scmp.eq.s32.totalorder %s16, 1
      %p39 = por %p37, %p38
      %p41 = scmp.ne.s32.totalorder %s24, %s40
      %p42 = scmp.eq.s32.totalorder %s16, 0
      %p43 = por %p41, %p42
      %s44 = sadd.s32 %s10, 2
      %s45 = sadd.s32 %s17, 2
      %s46 = ssub.s32 %s44, %s45
      %p47 = scmp.eq.s32.totalorder %s46, 0
      %s49 = sadd.s32 %s48, 1
      %s50 = scalar_select %p47, %s48, %s49
      %p53 = pneg %p47
      %p54 = scmp.eq.s32.totalorder %s10, 1
      %p55 = por %p53, %p54
      %p56 = scmp.ne.s32.totalorder %s48, %s51
      %p57 = scmp.eq.s32.totalorder %s10, 0
      %p58 = por %p56, %p57
      %p59 = scmp.ne.s32.totalorder %s48, %s51
      %p60 = scmp.eq.s32.totalorder %s15, 1
      %p61 = por %p59, %p60
      %p62 = scmp.ne.s32.totalorder %s51, %s52
      %p63 = scmp.eq.s32.totalorder %s15, 0
      %p64 = por %p62, %p63
      %p65 = scmp.ne.s32.totalorder %s51, %s52
      %p66 = scmp.eq.s32.totalorder %s16, 1
      %p67 = por %p65, %p66
      %p69 = scmp.ne.s32.totalorder %s52, %s68
      %p70 = scmp.eq.s32.totalorder %s16, 0
      %p71 = por %p69, %p70
      %s72 = ssub.s32 %s10, %s17
      %p73 = scmp.eq.s32.totalorder %s72, 0
      %s75 = sadd.s32 %s74, 1
      %s76 = scalar_select %p73, %s74, %s75
      %p79 = pneg %p73
      %p80 = scmp.eq.s32.totalorder %s10, 1
      %p81 = por %p79, %p80
      %p82 = scmp.ne.s32.totalorder %s74, %s77
      %p83 = scmp.eq.s32.totalorder %s10, 0
      %p84 = por %p82, %p83
      %p85 = scmp.ne.s32.totalorder %s74, %s77
      %p86 = scmp.eq.s32.totalorder %s15, 1
      %p87 = por %p85, %p86
      %p88 = scmp.ne.s32.totalorder %s77, %s78
      %p89 = scmp.eq.s32.totalorder %s15, 0
      %p90 = por %p88, %p89
      %p91 = scmp.ne.s32.totalorder %s77, %s78
      %p92 = scmp.eq.s32.totalorder %s16, 1
      %p93 = por %p91, %p92
      %p95 = scmp.ne.s32.totalorder %s78, %s94
      %p96 = scmp.eq.s32.totalorder %s16, 0
      %p97 = por %p95, %p96
      %s98 = ssub.s32 %s10, %s17
      %p99 = scmp.eq.s32.totalorder %s98, 0
      %s101 = sadd.s32 %s100, 1
      %s102 = scalar_select %p99, %s100, %s101
      %p105 = pneg %p99
      %p106 = scmp.eq.s32.totalorder %s10, 1
      %p107 = por %p105, %p106
      %p108 = scmp.ne.s32.totalorder %s100, %s103
      %p109 = scmp.eq.s32.totalorder %s10, 0
      %p110 = por %p108, %p109
      %p111 = scmp.ne.s32.totalorder %s100, %s103
      %p112 = scmp.eq.s32.totalorder %s15, 1
      %p113 = por %p111, %p112
      %p114 = scmp.ne.s32.totalorder %s103, %s104
      %p115 = scmp.eq.s32.totalorder %s15, 0
      %p116 = por %p114, %p115
      %p117 = scmp.ne.s32.totalorder %s103, %s104
      %p118 = scmp.eq.s32.totalorder %s16, 1
      %p119 = por %p117, %p118
      %p121 = scmp.ne.s32.totalorder %s104, %s120
      %p122 = scmp.eq.s32.totalorder %s16, 0
      %p123 = por %p121, %p122
      %p124 = scmp.le.s32.totalorder 1, %s10
      %p125 = scmp.lt.s32.totalorder %s10, 3
      %p126 = pnand %p124, %p125
      %p127 = pneg %p126
      // Predicated region
      $region9: #{depthwise_conv3x3_s2_p1.2} parent=5 // pred_check
        _
      $region10: #{depthwise_conv3x3_s2_p1.2} parent=5 // pred_check_branch
        %129 = sbr.rel (%p126) target = $region12
      $region11: #{depthwise_conv3x3_s2_p1.2} parent=5 // pred_region
        %s130 = ssub.s32 %s10, 1
      $region12: #{depthwise_conv3x3_s2_p1.2} parent=5 // pred_fallthru
        _
      %p131 = scmp.lt.s32.totalorder %s10, 2
      // Predicated region
      $region13: #{depthwise_conv3x3_s2_p1.2} parent=5 // pred_check
        %p132 = pneg %p131
      $region14: #{depthwise_conv3x3_s2_p1.2} parent=5 // pred_check_branch
        %134 = sbr.rel (%p132) target = $region16
      $region15: #{depthwise_conv3x3_s2_p1.2} parent=5 // pred_region
        // Predicated region
        $region17: #{depthwise_conv3x3_s2_p1.2} parent=15 // pred_check
          %p135 = pneg %p30
        $region18: #{depthwise_conv3x3_s2_p1.2} parent=15 // pred_check_branch
          %137 = sbr.rel (%p135) target = $region20
        $region19: #{depthwise_conv3x3_s2_p1.2} parent=15 // pred_region
          %s138 = sand.u32 %s20, 1
          %s139 = sand.u32 %s20, 1
          %s140 = smul.addr %s139, 512
          %s141 = scalar_lea.vmem [#allocation7], %s140
          %s142 = smul.u32 4, %s10
          %s143 = smul.addr %s142, 8
          %s144 = scalar_lea.vmem %s0, %s143
          // Predicated region
          $region21: #{depthwise_conv3x3_s2_p1.2} parent=19 // pred_check
            _
          $region22: #{depthwise_conv3x3_s2_p1.2} parent=19 // pred_check_branch
            %146 = sbr.rel (0) target = $region24
          $region23: #{depthwise_conv3x3_s2_p1.2} parent=19 // pred_region
            // Predicated region
            $region25: #{depthwise_conv3x3_s2_p1.2} parent=23 // pred_check
              _
            $region26: #{depthwise_conv3x3_s2_p1.2} parent=23 // pred_check_branch
              %148 = sbr.rel (0) target = $region28
            $region27: #{depthwise_conv3x3_s2_p1.2} parent=23 // pred_region
              loop: start=0, step=1, limit=1
              $region29: #{depthwise_conv3x3_s2_p1.2} parent=27 // loop_pre_header
                _
              $region30: #{depthwise_conv3x3_s2_p1.2} parent=27 // loop_header
                %s150 = sphi 0, %s154
                %p151 = scmp.ge.s32.totalorder %s150, 1
                %s155 = sphi %s144, %s144
                %s156 = sphi %s141, %s141
              $region31: #{depthwise_conv3x3_s2_p1.2} parent=27 // loop_header_branch
                %153 = sbr.rel (%p151) target = $region35
              $region32: #{depthwise_conv3x3_s2_p1.2} parent=27 // loop_body
                %v157 = vld [vmem:[%s155] sm:$0xff]
                %158 = vst [vmem:[%s156] sm:$0xff] %v157
                %v159 = vld [vmem:[%s155 + $0x8] sm:$0xff]
                %160 = vst [vmem:[%s156 + $0x8] sm:$0xff] %v159
                %v161 = vld [vmem:[%s155 + $0x10] sm:$0xff]
                %162 = vst [vmem:[%s156 + $0x10] sm:$0xff] %v161
                %v163 = vld [vmem:[%s155 + $0x18] sm:$0xff]
                %164 = vst [vmem:[%s156 + $0x18] sm:$0xff] %v163
                %v165 = vld [vmem:[%s155 + $0x80] sm:$0xff]
                %166 = vst [vmem:[%s156 + $0x20] sm:$0xff] %v165
                %v167 = vld [vmem:[%s155 + $0x88] sm:$0xff]
                %168 = vst [vmem:[%s156 + $0x28] sm:$0xff] %v167
                %v169 = vld [vmem:[%s155 + $0x90] sm:$0xff]
                %170 = vst [vmem:[%s156 + $0x30] sm:$0xff] %v169
                %v171 = vld [vmem:[%s155 + $0x98] sm:$0xff]
                %172 = vst [vmem:[%s156 + $0x38] sm:$0xff] %v171
                %v173 = vld [vmem:[%s155 + $0x100] sm:$0xff]
                %174 = vst [vmem:[%s156 + $0x40] sm:$0xff] %v173
                %v175 = vld [vmem:[%s155 + $0x108] sm:$0xff]
                %176 = vst [vmem:[%s156 + $0x48] sm:$0xff] %v175
                %v177 = vld [vmem:[%s155 + $0x110] sm:$0xff]
                %178 = vst [vmem:[%s156 + $0x50] sm:$0xff] %v177
                %v179 = vld [vmem:[%s155 + $0x118] sm:$0xff]
                %180 = vst [vmem:[%s156 + $0x58] sm:$0xff] %v179
                %v181 = vld [vmem:[%s155 + $0x180] sm:$0xff]
                %182 = vst [vmem:[%s156 + $0x60] sm:$0xff] %v181
                %v183 = vld [vmem:[%s155 + $0x188] sm:$0xff]
                %184 = vst [vmem:[%s156 + $0x68] sm:$0xff] %v183
                %v185 = vld [vmem:[%s155 + $0x190] sm:$0xff]
                %186 = vst [vmem:[%s156 + $0x70] sm:$0xff] %v185
                %v187 = vld [vmem:[%s155 + $0x198] sm:$0xff]
                %188 = vst [vmem:[%s156 + $0x78] sm:$0xff] %v187
                %v189 = vld [vmem:[%s155 + $0x200] sm:$0xff]
                %190 = vst [vmem:[%s156 + $0x80] sm:$0xff] %v189
                %v191 = vld [vmem:[%s155 + $0x208] sm:$0xff]
                %192 = vst [vmem:[%s156 + $0x88] sm:$0xff] %v191
                %v193 = vld [vmem:[%s155 + $0x210] sm:$0xff]
                %194 = vst [vmem:[%s156 + $0x90] sm:$0xff] %v193
                %v195 = vld [vmem:[%s155 + $0x218] sm:$0xff]
                %196 = vst [vmem:[%s156 + $0x98] sm:$0xff] %v195
                %v197 = vld [vmem:[%s155 + $0x280] sm:$0xff]
                %198 = vst [vmem:[%s156 + $0xa0] sm:$0xff] %v197
                %v199 = vld [vmem:[%s155 + $0x288] sm:$0xff]
                %200 = vst [vmem:[%s156 + $0xa8] sm:$0xff] %v199
                %v201 = vld [vmem:[%s155 + $0x290] sm:$0xff]
                %202 = vst [vmem:[%s156 + $0xb0] sm:$0xff] %v201
                %v203 = vld [vmem:[%s155 + $0x298] sm:$0xff]
                %204 = vst [vmem:[%s156 + $0xb8] sm:$0xff] %v203
                %v205 = vld [vmem:[%s155 + $0x300] sm:$0xff]
                %206 = vst [vmem:[%s156 + $0xc0] sm:$0xff] %v205
                %v207 = vld [vmem:[%s155 + $0x308] sm:$0xff]
                %208 = vst [vmem:[%s156 + $0xc8] sm:$0xff] %v207
                %v209 = vld [vmem:[%s155 + $0x310] sm:$0xff]
                %210 = vst [vmem:[%s156 + $0xd0] sm:$0xff] %v209
                %v211 = vld [vmem:[%s155 + $0x318] sm:$0xff]
                %212 = vst [vmem:[%s156 + $0xd8] sm:$0xff] %v211
                %v213 = vld [vmem:[%s155 + $0x380] sm:$0xff]
                %214 = vst [vmem:[%s156 + $0xe0] sm:$0xff] %v213
                %v215 = vld [vmem:[%s155 + $0x388] sm:$0xff]
                %216 = vst [vmem:[%s156 + $0xe8] sm:$0xff] %v215
                %v217 = vld [vmem:[%s155 + $0x390] sm:$0xff]
                %218 = vst [vmem:[%s156 + $0xf0] sm:$0xff] %v217
                %v219 = vld [vmem:[%s155 + $0x398] sm:$0xff]
                %220 = vst [vmem:[%s156 + $0xf8] sm:$0xff] %v219
                %v221 = vld [vmem:[%s155 + $0x400] sm:$0xff]
                %222 = vst [vmem:[%s156 + $0x100] sm:$0xff] %v221
                %v223 = vld [vmem:[%s155 + $0x408] sm:$0xff]
                %224 = vst [vmem:[%s156 + $0x108] sm:$0xff] %v223
                %v225 = vld [vmem:[%s155 + $0x410] sm:$0xff]
                %226 = vst [vmem:[%s156 + $0x110] sm:$0xff] %v225
                %v227 = vld [vmem:[%s155 + $0x418] sm:$0xff]
                %228 = vst [vmem:[%s156 + $0x118] sm:$0xff] %v227
                %v229 = vld [vmem:[%s155 + $0x480] sm:$0xff]
                %230 = vst [vmem:[%s156 + $0x120] sm:$0xff] %v229
                %v231 = vld [vmem:[%s155 + $0x488] sm:$0xff]
                %232 = vst [vmem:[%s156 + $0x128] sm:$0xff] %v231
                %v233 = vld [vmem:[%s155 + $0x490] sm:$0xff]
                %234 = vst [vmem:[%s156 + $0x130] sm:$0xff] %v233
                %v235 = vld [vmem:[%s155 + $0x498] sm:$0xff]
                %236 = vst [vmem:[%s156 + $0x138] sm:$0xff] %v235
                %v237 = vld [vmem:[%s155 + $0x500] sm:$0xff]
                %238 = vst [vmem:[%s156 + $0x140] sm:$0xff] %v237
                %v239 = vld [vmem:[%s155 + $0x508] sm:$0xff]
                %240 = vst [vmem:[%s156 + $0x148] sm:$0xff] %v239
                %v241 = vld [vmem:[%s155 + $0x510] sm:$0xff]
                %242 = vst [vmem:[%s156 + $0x150] sm:$0xff] %v241
                %v243 = vld [vmem:[%s155 + $0x518] sm:$0xff]
                %244 = vst [vmem:[%s156 + $0x158] sm:$0xff] %v243
                %v245 = vld [vmem:[%s155 + $0x580] sm:$0xff]
                %246 = vst [vmem:[%s156 + $0x160] sm:$0xff] %v245
                %v247 = vld [vmem:[%s155 + $0x588] sm:$0xff]
                %248 = vst [vmem:[%s156 + $0x168] sm:$0xff] %v247
                %v249 = vld [vmem:[%s155 + $0x590] sm:$0xff]
                %250 = vst [vmem:[%s156 + $0x170] sm:$0xff] %v249
                %v251 = vld [vmem:[%s155 + $0x598] sm:$0xff]
                %252 = vst [vmem:[%s156 + $0x178] sm:$0xff] %v251
                %v253 = vld [vmem:[%s155 + $0x600] sm:$0xff]
                %254 = vst [vmem:[%s156 + $0x180] sm:$0xff] %v253
                %v255 = vld [vmem:[%s155 + $0x608] sm:$0xff]
                %256 = vst [vmem:[%s156 + $0x188] sm:$0xff] %v255
                %v257 = vld [vmem:[%s155 + $0x610] sm:$0xff]
                %258 = vst [vmem:[%s156 + $0x190] sm:$0xff] %v257
                %v259 = vld [vmem:[%s155 + $0x618] sm:$0xff]
                %260 = vst [vmem:[%s156 + $0x198] sm:$0xff] %v259
                %v261 = vld [vmem:[%s155 + $0x680] sm:$0xff]
                %262 = vst [vmem:[%s156 + $0x1a0] sm:$0xff] %v261
                %v263 = vld [vmem:[%s155 + $0x688] sm:$0xff]
                %264 = vst [vmem:[%s156 + $0x1a8] sm:$0xff] %v263
                %v265 = vld [vmem:[%s155 + $0x690] sm:$0xff]
                %266 = vst [vmem:[%s156 + $0x1b0] sm:$0xff] %v265
                %v267 = vld [vmem:[%s155 + $0x698] sm:$0xff]
                %268 = vst [vmem:[%s156 + $0x1b8] sm:$0xff] %v267
                %v269 = vld [vmem:[%s155 + $0x700] sm:$0xff]
                %270 = vst [vmem:[%s156 + $0x1c0] sm:$0xff] %v269
                %v271 = vld [vmem:[%s155 + $0x708] sm:$0xff]
                %272 = vst [vmem:[%s156 + $0x1c8] sm:$0xff] %v271
                %v273 = vld [vmem:[%s155 + $0x710] sm:$0xff]
                %274 = vst [vmem:[%s156 + $0x1d0] sm:$0xff] %v273
                %v275 = vld [vmem:[%s155 + $0x718] sm:$0xff]
                %276 = vst [vmem:[%s156 + $0x1d8] sm:$0xff] %v275
                %v277 = vld [vmem:[%s155 + $0x780] sm:$0xff]
                %278 = vst [vmem:[%s156 + $0x1e0] sm:$0xff] %v277
                %v279 = vld [vmem:[%s155 + $0x788] sm:$0xff]
                %280 = vst [vmem:[%s156 + $0x1e8] sm:$0xff] %v279
                %v281 = vld [vmem:[%s155 + $0x790] sm:$0xff]
                %282 = vst [vmem:[%s156 + $0x1f0] sm:$0xff] %v281
                %v283 = vld [vmem:[%s155 + $0x798] sm:$0xff]
                %284 = vst [vmem:[%s156 + $0x1f8] sm:$0xff] %v283
              $region33: #{depthwise_conv3x3_s2_p1.2} parent=27 // loop_footer
                %s154 = sadd.s32 1, %s150
              $region34: #{depthwise_conv3x3_s2_p1.2} parent=27 // loop_footer_branch
                %149 = sbr.rel target = $region30
              $region35: #{depthwise_conv3x3_s2_p1.2} parent=27 // loop_exit
                _
            $region28: #{depthwise_conv3x3_s2_p1.2} parent=23 // pred_fallthru
              _
            // Predicated region
            $region36: #{depthwise_conv3x3_s2_p1.2} parent=23 // pred_check
              _
            $region37: #{depthwise_conv3x3_s2_p1.2} parent=23 // pred_check_branch
              %286 = sbr.rel target = $region39
            $region38: #{depthwise_conv3x3_s2_p1.2} parent=23 // pred_region
              _
            $region39: #{depthwise_conv3x3_s2_p1.2} parent=23 // pred_fallthru
              _
          $region24: #{depthwise_conv3x3_s2_p1.2} parent=19 // pred_fallthru
            _
          %287 = vnop
        $region20: #{depthwise_conv3x3_s2_p1.2} parent=15 // pred_fallthru
          _
        // Predicated region
        $region40: #{depthwise_conv3x3_s2_p1.2} parent=15 // pred_check
          %p288 = pneg %p58
        $region41: #{depthwise_conv3x3_s2_p1.2} parent=15 // pred_check_branch
          %290 = sbr.rel (%p288) target = $region43
        $region42: #{depthwise_conv3x3_s2_p1.2} parent=15 // pred_region
          %s291 = sand.u32 %s48, 1
          %s292 = sand.u32 %s48, 1
          %s293 = smul.addr %s292, 512
          %s294 = scalar_lea.vmem [#allocation8], %s293
          %s295 = sadd.s32 %s10, 2
          %s296 = smul.u32 4, %s295
          %s297 = smul.addr %s296, 8
          %s298 = scalar_lea.vmem %s0, %s297
          // Predicated region
          $region44: #{depthwise_conv3x3_s2_p1.2} parent=42 // pred_check
            _
          $region45: #{depthwise_conv3x3_s2_p1.2} parent=42 // pred_check_branch
            %300 = sbr.rel (0) target = $region47
          $region46: #{depthwise_conv3x3_s2_p1.2} parent=42 // pred_region
            // Predicated region
            $region48: #{depthwise_conv3x3_s2_p1.2} parent=46 // pred_check
              _
            $region49: #{depthwise_conv3x3_s2_p1.2} parent=46 // pred_check_branch
              %302 = sbr.rel (0) target = $region51
            $region50: #{depthwise_conv3x3_s2_p1.2} parent=46 // pred_region
              loop: start=0, step=1, limit=1
              $region52: #{depthwise_conv3x3_s2_p1.2} parent=50 // loop_pre_header
                _
              $region53: #{depthwise_conv3x3_s2_p1.2} parent=50 // loop_header
                %s304 = sphi 0, %s308
                %p305 = scmp.ge.s32.totalorder %s304, 1
                %s309 = sphi %s298, %s298
                %s310 = sphi %s294, %s294
              $region54: #{depthwise_conv3x3_s2_p1.2} parent=50 // loop_header_branch
                %307 = sbr.rel (%p305) target = $region58
              $region55: #{depthwise_conv3x3_s2_p1.2} parent=50 // loop_body
                %v311 = vld [vmem:[%s309] sm:$0xff]
                %312 = vst [vmem:[%s310] sm:$0xff] %v311
                %v313 = vld [vmem:[%s309 + $0x8] sm:$0xff]
                %314 = vst [vmem:[%s310 + $0x8] sm:$0xff] %v313
                %v315 = vld [vmem:[%s309 + $0x10] sm:$0xff]
                %316 = vst [vmem:[%s310 + $0x10] sm:$0xff] %v315
                %v317 = vld [vmem:[%s309 + $0x18] sm:$0xff]
                %318 = vst [vmem:[%s310 + $0x18] sm:$0xff] %v317
                %v319 = vld [vmem:[%s309 + $0x80] sm:$0xff]
                %320 = vst [vmem:[%s310 + $0x20] sm:$0xff] %v319
                %v321 = vld [vmem:[%s309 + $0x88] sm:$0xff]
                %322 = vst [vmem:[%s310 + $0x28] sm:$0xff] %v321
                %v323 = vld [vmem:[%s309 + $0x90] sm:$0xff]
                %324 = vst [vmem:[%s310 + $0x30] sm:$0xff] %v323
                %v325 = vld [vmem:[%s309 + $0x98] sm:$0xff]
                %326 = vst [vmem:[%s310 + $0x38] sm:$0xff] %v325
                %v327 = vld [vmem:[%s309 + $0x100] sm:$0xff]
                %328 = vst [vmem:[%s310 + $0x40] sm:$0xff] %v327
                %v329 = vld [vmem:[%s309 + $0x108] sm:$0xff]
                %330 = vst [vmem:[%s310 + $0x48] sm:$0xff] %v329
                %v331 = vld [vmem:[%s309 + $0x110] sm:$0xff]
                %332 = vst [vmem:[%s310 + $0x50] sm:$0xff] %v331
                %v333 = vld [vmem:[%s309 + $0x118] sm:$0xff]
                %334 = vst [vmem:[%s310 + $0x58] sm:$0xff] %v333
                %v335 = vld [vmem:[%s309 + $0x180] sm:$0xff]
                %336 = vst [vmem:[%s310 + $0x60] sm:$0xff] %v335
                %v337 = vld [vmem:[%s309 + $0x188] sm:$0xff]
                %338 = vst [vmem:[%s310 + $0x68] sm:$0xff] %v337
                %v339 = vld [vmem:[%s309 + $0x190] sm:$0xff]
                %340 = vst [vmem:[%s310 + $0x70] sm:$0xff] %v339
                %v341 = vld [vmem:[%s309 + $0x198] sm:$0xff]
                %342 = vst [vmem:[%s310 + $0x78] sm:$0xff] %v341
                %v343 = vld [vmem:[%s309 + $0x200] sm:$0xff]
                %344 = vst [vmem:[%s310 + $0x80] sm:$0xff] %v343
                %v345 = vld [vmem:[%s309 + $0x208] sm:$0xff]
                %346 = vst [vmem:[%s310 + $0x88] sm:$0xff] %v345
                %v347 = vld [vmem:[%s309 + $0x210] sm:$0xff]
                %348 = vst [vmem:[%s310 + $0x90] sm:$0xff] %v347
                %v349 = vld [vmem:[%s309 + $0x218] sm:$0xff]
                %350 = vst [vmem:[%s310 + $0x98] sm:$0xff] %v349
                %v351 = vld [vmem:[%s309 + $0x280] sm:$0xff]
                %352 = vst [vmem:[%s310 + $0xa0] sm:$0xff] %v351
                %v353 = vld [vmem:[%s309 + $0x288] sm:$0xff]
                %354 = vst [vmem:[%s310 + $0xa8] sm:$0xff] %v353
                %v355 = vld [vmem:[%s309 + $0x290] sm:$0xff]
                %356 = vst [vmem:[%s310 + $0xb0] sm:$0xff] %v355
                %v357 = vld [vmem:[%s309 + $0x298] sm:$0xff]
                %358 = vst [vmem:[%s310 + $0xb8] sm:$0xff] %v357
                %v359 = vld [vmem:[%s309 + $0x300] sm:$0xff]
                %360 = vst [vmem:[%s310 + $0xc0] sm:$0xff] %v359
                %v361 = vld [vmem:[%s309 + $0x308] sm:$0xff]
                %362 = vst [vmem:[%s310 + $0xc8] sm:$0xff] %v361
                %v363 = vld [vmem:[%s309 + $0x310] sm:$0xff]
                %364 = vst [vmem:[%s310 + $0xd0] sm:$0xff] %v363
                %v365 = vld [vmem:[%s309 + $0x318] sm:$0xff]
                %366 = vst [vmem:[%s310 + $0xd8] sm:$0xff] %v365
                %v367 = vld [vmem:[%s309 + $0x380] sm:$0xff]
                %368 = vst [vmem:[%s310 + $0xe0] sm:$0xff] %v367
                %v369 = vld [vmem:[%s309 + $0x388] sm:$0xff]
                %370 = vst [vmem:[%s310 + $0xe8] sm:$0xff] %v369
                %v371 = vld [vmem:[%s309 + $0x390] sm:$0xff]
                %372 = vst [vmem:[%s310 + $0xf0] sm:$0xff] %v371
                %v373 = vld [vmem:[%s309 + $0x398] sm:$0xff]
                %374 = vst [vmem:[%s310 + $0xf8] sm:$0xff] %v373
                %v375 = vld [vmem:[%s309 + $0x400] sm:$0xff]
                %376 = vst [vmem:[%s310 + $0x100] sm:$0xff] %v375
                %v377 = vld [vmem:[%s309 + $0x408] sm:$0xff]
                %378 = vst [vmem:[%s310 + $0x108] sm:$0xff] %v377
                %v379 = vld [vmem:[%s309 + $0x410] sm:$0xff]
                %380 = vst [vmem:[%s310 + $0x110] sm:$0xff] %v379
                %v381 = vld [vmem:[%s309 + $0x418] sm:$0xff]
                %382 = vst [vmem:[%s310 + $0x118] sm:$0xff] %v381
                %v383 = vld [vmem:[%s309 + $0x480] sm:$0xff]
                %384 = vst [vmem:[%s310 + $0x120] sm:$0xff] %v383
                %v385 = vld [vmem:[%s309 + $0x488] sm:$0xff]
                %386 = vst [vmem:[%s310 + $0x128] sm:$0xff] %v385
                %v387 = vld [vmem:[%s309 + $0x490] sm:$0xff]
                %388 = vst [vmem:[%s310 + $0x130] sm:$0xff] %v387
                %v389 = vld [vmem:[%s309 + $0x498] sm:$0xff]
                %390 = vst [vmem:[%s310 + $0x138] sm:$0xff] %v389
                %v391 = vld [vmem:[%s309 + $0x500] sm:$0xff]
                %392 = vst [vmem:[%s310 + $0x140] sm:$0xff] %v391
                %v393 = vld [vmem:[%s309 + $0x508] sm:$0xff]
                %394 = vst [vmem:[%s310 + $0x148] sm:$0xff] %v393
                %v395 = vld [vmem:[%s309 + $0x510] sm:$0xff]
                %396 = vst [vmem:[%s310 + $0x150] sm:$0xff] %v395
                %v397 = vld [vmem:[%s309 + $0x518] sm:$0xff]
                %398 = vst [vmem:[%s310 + $0x158] sm:$0xff] %v397
                %v399 = vld [vmem:[%s309 + $0x580] sm:$0xff]
                %400 = vst [vmem:[%s310 + $0x160] sm:$0xff] %v399
                %v401 = vld [vmem:[%s309 + $0x588] sm:$0xff]
                %402 = vst [vmem:[%s310 + $0x168] sm:$0xff] %v401
                %v403 = vld [vmem:[%s309 + $0x590] sm:$0xff]
                %404 = vst [vmem:[%s310 + $0x170] sm:$0xff] %v403
                %v405 = vld [vmem:[%s309 + $0x598] sm:$0xff]
                %406 = vst [vmem:[%s310 + $0x178] sm:$0xff] %v405
                %v407 = vld [vmem:[%s309 + $0x600] sm:$0xff]
                %408 = vst [vmem:[%s310 + $0x180] sm:$0xff] %v407
                %v409 = vld [vmem:[%s309 + $0x608] sm:$0xff]
                %410 = vst [vmem:[%s310 + $0x188] sm:$0xff] %v409
                %v411 = vld [vmem:[%s309 + $0x610] sm:$0xff]
                %412 = vst [vmem:[%s310 + $0x190] sm:$0xff] %v411
                %v413 = vld [vmem:[%s309 + $0x618] sm:$0xff]
                %414 = vst [vmem:[%s310 + $0x198] sm:$0xff] %v413
                %v415 = vld [vmem:[%s309 + $0x680] sm:$0xff]
                %416 = vst [vmem:[%s310 + $0x1a0] sm:$0xff] %v415
                %v417 = vld [vmem:[%s309 + $0x688] sm:$0xff]
                %418 = vst [vmem:[%s310 + $0x1a8] sm:$0xff] %v417
                %v419 = vld [vmem:[%s309 + $0x690] sm:$0xff]
                %420 = vst [vmem:[%s310 + $0x1b0] sm:$0xff] %v419
                %v421 = vld [vmem:[%s309 + $0x698] sm:$0xff]
                %422 = vst [vmem:[%s310 + $0x1b8] sm:$0xff] %v421
                %v423 = vld [vmem:[%s309 + $0x700] sm:$0xff]
                %424 = vst [vmem:[%s310 + $0x1c0] sm:$0xff] %v423
                %v425 = vld [vmem:[%s309 + $0x708] sm:$0xff]
                %426 = vst [vmem:[%s310 + $0x1c8] sm:$0xff] %v425
                %v427 = vld [vmem:[%s309 + $0x710] sm:$0xff]
                %428 = vst [vmem:[%s310 + $0x1d0] sm:$0xff] %v427
                %v429 = vld [vmem:[%s309 + $0x718] sm:$0xff]
                %430 = vst [vmem:[%s310 + $0x1d8] sm:$0xff] %v429
                %v431 = vld [vmem:[%s309 + $0x780] sm:$0xff]
                %432 = vst [vmem:[%s310 + $0x1e0] sm:$0xff] %v431
                %v433 = vld [vmem:[%s309 + $0x788] sm:$0xff]
                %434 = vst [vmem:[%s310 + $0x1e8] sm:$0xff] %v433
                %v435 = vld [vmem:[%s309 + $0x790] sm:$0xff]
                %436 = vst [vmem:[%s310 + $0x1f0] sm:$0xff] %v435
                %v437 = vld [vmem:[%s309 + $0x798] sm:$0xff]
                %438 = vst [vmem:[%s310 + $0x1f8] sm:$0xff] %v437
              $region56: #{depthwise_conv3x3_s2_p1.2} parent=50 // loop_footer
                %s308 = sadd.s32 1, %s304
              $region57: #{depthwise_conv3x3_s2_p1.2} parent=50 // loop_footer_branch
                %303 = sbr.rel target = $region53
              $region58: #{depthwise_conv3x3_s2_p1.2} parent=50 // loop_exit
                _
            $region51: #{depthwise_conv3x3_s2_p1.2} parent=46 // pred_fallthru
              _
            // Predicated region
            $region59: #{depthwise_conv3x3_s2_p1.2} parent=46 // pred_check
              _
            $region60: #{depthwise_conv3x3_s2_p1.2} parent=46 // pred_check_branch
              %440 = sbr.rel target = $region62
            $region61: #{depthwise_conv3x3_s2_p1.2} parent=46 // pred_region
              _
            $region62: #{depthwise_conv3x3_s2_p1.2} parent=46 // pred_fallthru
              _
          $region47: #{depthwise_conv3x3_s2_p1.2} parent=42 // pred_fallthru
            _
          %441 = vnop
        $region43: #{depthwise_conv3x3_s2_p1.2} parent=15 // pred_fallthru
          _
        // Predicated region
        $region63: #{depthwise_conv3x3_s2_p1.2} parent=15 // pred_check
          %p442 = pneg %p84
        $region64: #{depthwise_conv3x3_s2_p1.2} parent=15 // pred_check_branch
          %444 = sbr.rel (%p442) target = $region66
        $region65: #{depthwise_conv3x3_s2_p1.2} parent=15 // pred_region
          %s445 = smul.u32 4, %s10
          %s446 = ssub.s32 8, %s445
          %p447 = scmp.lt.s32.totalorder %s446, 4
          %s448 = scalar_select %p447, %s446, 4
          %s449 = smul.u32 256, %s448
          %p450 = scmp.lt.s32.totalorder %s445, 7
          %s451 = scalar_select %p450, %s445, 7
          %s452 = smul.addr %s451, 8
          %s453 = scalar_lea.vmem %s1, %s452
          %s454 = smul.u32 4, %s10
          %s455 = ssub.s32 8, %s454
          %p456 = scmp.lt.s32.totalorder %s455, 4
          %s457 = scalar_select %p456, %s455, 4
          %s458 = smul.u32 256, %s457
        $region66: #{depthwise_conv3x3_s2_p1.2} parent=15 // pred_fallthru
          _
      $region16: #{depthwise_conv3x3_s2_p1.2} parent=5 // pred_fallthru
        _
      %p459 = scmp.le.s32.totalorder 1, %s10
      %p460 = scmp.lt.s32.totalorder %s10, 3
      %p461 = pnand %p459, %p460
      %p462 = pneg %p461
      // Predicated region
      $region67: #{depthwise_conv3x3_s2_p1.2} parent=5 // pred_check
        _
      $region68: #{depthwise_conv3x3_s2_p1.2} parent=5 // pred_check_branch
        %464 = sbr.rel (%p461) target = $region70
      $region69: #{depthwise_conv3x3_s2_p1.2} parent=5 // pred_region
        #allocation10 [shape = 'u8[32768]{0}', space=vmem, size = 0x8000, dematerialized = true, scoped, tag = 'FusionAdapter Buffer %fusion.1 = f32[9,1024]{1,0:T(8,128)} fusion(%param_1.1, %param_2), kind=kLoop, calls=%fused_computation.3.clone, metadata={op_name="jit(depthwise_conv3x3_s2_p1)/jit(_pad)/pad" stack_frame_id=13}']
        %s465 = ssub.s32 %s10, 1
        %s466 = sand.u32 %s23, 1
        %s467 = sand.u32 %s23, 1
        %s468 = smul.addr %s467, 512
        %s469 = scalar_lea.vmem [#allocation7], %s468
        // Predicated region
        $region71: #{depthwise_conv3x3_s2_p1.2} parent=69 // pred_check
          %p470 = pneg %p36
        $region72: #{depthwise_conv3x3_s2_p1.2} parent=69 // pred_check_branch
          %472 = sbr.rel (%p470) target = $region74
        $region73: #{depthwise_conv3x3_s2_p1.2} parent=69 // pred_region
          _
        $region74: #{depthwise_conv3x3_s2_p1.2} parent=69 // pred_fallthru
          _
        %s473 = sand.u32 %s51, 1
        %s474 = sand.u32 %s51, 1
        %s475 = smul.addr %s474, 512
        %s476 = scalar_lea.vmem [#allocation8], %s475
        // Predicated region
        $region75: #{depthwise_conv3x3_s2_p1.2} parent=69 // pred_check
          %p477 = pneg %p64
        $region76: #{depthwise_conv3x3_s2_p1.2} parent=69 // pred_check_branch
          %479 = sbr.rel (%p477) target = $region78
        $region77: #{depthwise_conv3x3_s2_p1.2} parent=69 // pred_region
          _
        $region78: #{depthwise_conv3x3_s2_p1.2} parent=69 // pred_fallthru
          _
        %s480 = sand.u32 %s23, 1
        %s481 = sand.u32 %s23, 1
        %s482 = smul.addr %s481, 512
        %s483 = scalar_lea.vmem [#allocation7], %s482
        %p484 = pneg %p36
        %p485 = pneg %p33
        %s486 = sand.u32 %s51, 1
        %s487 = sand.u32 %s51, 1
        %s488 = smul.addr %s487, 512
        %s489 = scalar_lea.vmem [#allocation8], %s488
        %p490 = pneg %p64
        %p491 = pneg %p61
        %s492 = smul.u32 4, %s15
        %s493 = ssub.s32 8, %s492
        %p494 = scmp.lt.s32.totalorder %s493, 4
        %s495 = scalar_select %p494, %s493, 4
        %s496 = smul.u32 256, %s495
        %p497 = scmp.lt.s32.totalorder %s492, 7
        %s498 = scalar_select %p497, %s492, 7
        %s499 = smul.addr %s498, 8
        %s500 = scalar_lea.vmem %s1, %s499
        %p501 = pneg %p90
        %p502 = pneg %p87
        %p503 = pneg %p116
        %p504 = pneg %p113
        %s505 = sand.u32 %s103, 1
        %s506 = sand.u32 %s103, 1
        %s507 = smul.addr %s506, 224
        %s508 = scalar_lea.vmem [#allocation9], %s507
        %s509 = smul.u32 4, %s15
        %s510 = sadd.s32 %s15, 2
        %s511 = smul.u32 4, %s510
        %s512 = smul.u32 4, %s15
        %s513 = ssub.s32 8, %s512
        %p514 = scmp.lt.s32.totalorder %s513, 4
        %s515 = scalar_select %p514, %s513, 4
        %s516 = smul.u32 256, %s515
        %p517 = scmp.lt.s32.totalorder %s512, 7
        %s518 = scalar_select %p517, %s512, 7
        %s519 = smul.addr %s518, 8
        %s520 = scalar_lea.vmem %s1, %s519
        %s521 = smul.u32 4, %s15
        %s522 = ssub.s32 8, %s521
        %p523 = scmp.lt.s32.totalorder %s522, 4
        %s524 = scalar_select %p523, %s522, 4
        %s525 = smul.u32 256, %s524
        %s526 = smul.u32 4, %s15
        %v527 = vld [vmem:[%s520] sm:$0xff]
        %v528 = vlaneseq
        %v529 = vshrl.u32 %v528, 7
        %vm531 = vcmp.lt.s32.totalorder %v529, 9
        %v532 = vsel %vm531, %v527, %v8
        %s533 = smul.addr %s521, 128
        %v534 = vlaneseq
        %v535 = vand.u32 %v534, 127
        %v536 = vstv %s533
        %v537 = vadd.s32 %v535, %v536
        %vm538 = vcmp.lt.s32.totalorder %v537, 960
        %v539 = vsel %vm538, %v532, %v8
        %541 = vst [vmem:[#allocation10] sm:$0xff] %v539
        %s542 = scalar_lea.vmem %s520, 8
        %v543 = vld [vmem:[%s542] sm:$0xff]
        %v544 = vlaneseq
        %v545 = vshrl.u32 %v544, 7
        %vm547 = vcmp.lt.s32.totalorder %v545, 9
        %v548 = vsel %vm547, %v543, %v8
        %s549 = sadd.s32 %s521, 1
        %s550 = smul.addr %s549, 128
        %v551 = vlaneseq
        %v552 = vand.u32 %v551, 127
        %v553 = vstv %s550
        %v554 = vadd.s32 %v552, %v553
        %vm555 = vcmp.lt.s32.totalorder %v554, 960
        %v556 = vsel %vm555, %v548, %v8
        %s557 = scalar_lea.vmem [#allocation10], 8
        %559 = vst [vmem:[%s557] sm:$0xff] %v556
        %s560 = scalar_lea.vmem %s520, 16
        %v561 = vld [vmem:[%s560] sm:$0xff]
        %v562 = vlaneseq
        %v563 = vshrl.u32 %v562, 7
        %vm565 = vcmp.lt.s32.totalorder %v563, 9
        %v566 = vsel %vm565, %v561, %v8
        %s567 = sadd.s32 %s521, 2
        %s568 = smul.addr %s567, 128
        %v569 = vlaneseq
        %v570 = vand.u32 %v569, 127
        %v571 = vstv %s568
        %v572 = vadd.s32 %v570, %v571
        %vm573 = vcmp.lt.s32.totalorder %v572, 960
        %v574 = vsel %vm573, %v566, %v8
        %s575 = scalar_lea.vmem [#allocation10], 16
        %577 = vst [vmem:[%s575] sm:$0xff] %v574
        %s578 = scalar_lea.vmem %s520, 24
        %s579 = sadd.s32 %s521, 3
        %s580 = ssub.s32 7, %s579
        %p581 = scmp.lt.s32.totalorder %s580, 0
        %s582 = scalar_select %p581, 0, 255
        %v583 = vld [vmem:[%s578] sm:%s582]
        %s584 = sadd.s32 %s521, 3
        %s585 = ssub.s32 7, %s584
        %v586 = vstv %s585
        %vm587 = vcmp.lt.s32.totalorder %v586, 0
        %v588 = vsel %vm587, %v8, %v583
        %v589 = vlaneseq
        %v590 = vshrl.u32 %v589, 7
        %vm592 = vcmp.lt.s32.totalorder %v590, 9
        %v593 = vsel %vm592, %v588, %v8
        %s594 = sadd.s32 %s521, 3
        %s595 = smul.addr %s594, 128
        %v596 = vlaneseq
        %v597 = vand.u32 %v596, 127
        %v598 = vstv %s595
        %v599 = vadd.s32 %v597, %v598
        %vm600 = vcmp.lt.s32.totalorder %v599, 960
        %v601 = vsel %vm600, %v593, %v8
        %s602 = scalar_lea.vmem [#allocation10], 24
        %604 = vst [vmem:[%s602] sm:$0xff] %v601
        %s605 = scalar_lea.vmem %s520, 64
        %v606 = vld [vmem:[%s605] sm:$0xff]
        %v607 = vlaneseq
        %v608 = vshrl.u32 %v607, 7
        %v609 = vadd.s32 %v608, 8
        %vm610 = vcmp.lt.s32.totalorder %v609, 9
        %v611 = vsel %vm610, %v606, %v8
        %s612 = smul.addr %s521, 128
        %v613 = vlaneseq
        %v614 = vand.u32 %v613, 127
        %v615 = vstv %s612
        %v616 = vadd.s32 %v614, %v615
        %vm617 = vcmp.lt.s32.totalorder %v616, 960
        %v618 = vsel %vm617, %v611, %v8
        %s619 = scalar_lea.vmem [#allocation10], 32
        %621 = vst [vmem:[%s619] sm:$0xff] %v618
        %s622 = scalar_lea.vmem %s520, 72
        %v623 = vld [vmem:[%s622] sm:$0xff]
        %v624 = vlaneseq
        %v625 = vshrl.u32 %v624, 7
        %v626 = vadd.s32 %v625, 8
        %vm627 = vcmp.lt.s32.totalorder %v626, 9
        %v628 = vsel %vm627, %v623, %v8
        %s629 = sadd.s32 %s521, 1
        %s630 = smul.addr %s629, 128
        %v631 = vlaneseq
        %v632 = vand.u32 %v631, 127
        %v633 = vstv %s630
        %v634 = vadd.s32 %v632, %v633
        %vm635 = vcmp.lt.s32.totalorder %v634, 960
        %v636 = vsel %vm635, %v628, %v8
        %s637 = scalar_lea.vmem [#allocation10], 40
        %639 = vst [vmem:[%s637] sm:$0xff] %v636
        %s640 = scalar_lea.vmem %s520, 80
        %v641 = vld [vmem:[%s640] sm:$0xff]
        %v642 = vlaneseq
        %v643 = vshrl.u32 %v642, 7
        %v644 = vadd.s32 %v643, 8
        %vm645 = vcmp.lt.s32.totalorder %v644, 9
        %v646 = vsel %vm645, %v641, %v8
        %s647 = sadd.s32 %s521, 2
        %s648 = smul.addr %s647, 128
        %v649 = vlaneseq
        %v650 = vand.u32 %v649, 127
        %v651 = vstv %s648
        %v652 = vadd.s32 %v650, %v651
        %vm653 = vcmp.lt.s32.totalorder %v652, 960
        %v654 = vsel %vm653, %v646, %v8
        %s655 = scalar_lea.vmem [#allocation10], 48
        %657 = vst [vmem:[%s655] sm:$0xff] %v654
        %s658 = scalar_lea.vmem %s520, 88
        %s659 = sadd.s32 %s521, 3
        %s660 = ssub.s32 7, %s659
        %p661 = scmp.lt.s32.totalorder %s660, 0
        %s662 = scalar_select %p661, 0, 255
        %v663 = vld [vmem:[%s658] sm:%s662]
        %s664 = sadd.s32 %s521, 3
        %s665 = ssub.s32 7, %s664
        %v666 = vstv %s665
        %vm667 = vcmp.lt.s32.totalorder %v666, 0
        %v668 = vsel %vm667, %v8, %v663
        %v669 = vlaneseq
        %v670 = vshrl.u32 %v669, 7
        %v671 = vadd.s32 %v670, 8
        %vm672 = vcmp.lt.s32.totalorder %v671, 9
        %v673 = vsel %vm672, %v668, %v8
        %s674 = sadd.s32 %s521, 3
        %s675 = smul.addr %s674, 128
        %v676 = vlaneseq
        %v677 = vand.u32 %v676, 127
        %v678 = vstv %s675
        %v679 = vadd.s32 %v677, %v678
        %vm680 = vcmp.lt.s32.totalorder %v679, 960
        %v681 = vsel %vm680, %v673, %v8
        %s682 = scalar_lea.vmem [#allocation10], 56
        %684 = vst [vmem:[%s682] sm:$0xff] %v681
        %v685 = vld [vmem:[%s469] sm:$0x7f]
        %v686 = vld [vmem:[%s469 + $0x8] sm:$0x7f]
        %v687 = vld [vmem:[%s469 + $0x40] sm:$0x7f]
        %v688 = vld [vmem:[%s469 + $0x48] sm:$0x7f]
        %v689 = vld [vmem:[%s469 + $0x80] sm:$0x7f]
        %v690 = vld [vmem:[%s469 + $0x88] sm:$0x7f]
        %v691 = vld [vmem:[%s469 + $0xc0] sm:$0x7f]
        %v692 = vld [vmem:[%s469 + $0xc8] sm:$0x7f]
        %v693 = vld [vmem:[%s469 + $0x100] sm:$0x7f]
        %v694 = vld [vmem:[%s469 + $0x108] sm:$0x7f]
        %v695 = vld [vmem:[%s469 + $0x140] sm:$0x7f]
        %v696 = vld [vmem:[%s469 + $0x148] sm:$0x7f]
        %v697 = vld [vmem:[%s469 + $0x180] sm:$0x7f]
        %v698 = vld [vmem:[%s469 + $0x188] sm:$0x7f]
        %v699 = vld [vmem:[#allocation10] ss:$8 sm:$0x3]
        %v701 = vlaneseq
        %v702 = vshrl.u32 %v701, 7
        %v703 = vsub.s32 0, %v702
        %v704 = vrot.slane %v699, %v703
        %v705 = vlaneseq
        %v706 = vshrl.u32 %v705, 7
        %v707 = vsub.s32 1, %v706
        %v708 = vrot.slane %v699, %v707
        %v711 = vmul.f32 %v685, %v704
        %v712 = vmul.f32 %v686, %v708
        %v713 = vmul.f32 %v687, %v704
        %v714 = vmul.f32 %v688, %v708
        %v715 = vmul.f32 %v689, %v704
        %v716 = vmul.f32 %v690, %v708
        %v717 = vmul.f32 %v691, %v704
        %v718 = vmul.f32 %v692, %v708
        %v719 = vmul.f32 %v693, %v704
        %v720 = vmul.f32 %v694, %v708
        %v721 = vmul.f32 %v695, %v704
        %v722 = vmul.f32 %v696, %v708
        %v723 = vmul.f32 %v697, %v704
        %v724 = vmul.f32 %v698, %v708
        %v725 = vadd.f32 %v711, 0.0
        %v726 = vadd.f32 %v712, 0.0
        %v727 = vadd.f32 %v713, 0.0
        %v728 = vadd.f32 %v714, 0.0
        %v729 = vadd.f32 %v715, 0.0
        %v730 = vadd.f32 %v716, 0.0
        %v731 = vadd.f32 %v717, 0.0
        %v732 = vadd.f32 %v718, 0.0
        %v733 = vadd.f32 %v719, 0.0
        %v734 = vadd.f32 %v720, 0.0
        %v735 = vadd.f32 %v721, 0.0
        %v736 = vadd.f32 %v722, 0.0
        %v737 = vadd.f32 %v723, 0.0
        %v738 = vadd.f32 %v724, 0.0
        %v739 = vld [vmem:[%s476] sm:$0x7f]
        %v740 = vld [vmem:[%s476 + $0x8] sm:$0x7f]
        %v741 = vld [vmem:[%s476 + $0x40] sm:$0x7f]
        %v742 = vld [vmem:[%s476 + $0x48] sm:$0x7f]
        %v743 = vld [vmem:[%s476 + $0x80] sm:$0x7f]
        %v744 = vld [vmem:[%s476 + $0x88] sm:$0x7f]
        %v745 = vld [vmem:[%s476 + $0xc0] sm:$0x7f]
        %v746 = vld [vmem:[%s476 + $0xc8] sm:$0x7f]
        %v747 = vld [vmem:[%s476 + $0x100] sm:$0x7f]
        %v748 = vld [vmem:[%s476 + $0x108] sm:$0x7f]
        %v749 = vld [vmem:[%s476 + $0x140] sm:$0x7f]
        %v750 = vld [vmem:[%s476 + $0x148] sm:$0x7f]
        %v751 = vld [vmem:[%s476 + $0x180] sm:$0x7f]
        %v752 = vld [vmem:[%s476 + $0x188] sm:$0x7f]
        %s753 = scalar_lea.vmem [#allocation10], 1
        %v754 = vld [vmem:[%s753] ss:$8 sm:$0x3]
        %v756 = vlaneseq
        %v757 = vshrl.u32 %v756, 7
        %v758 = vsub.s32 0, %v757
        %v759 = vrot.slane %v754, %v758
        %v760 = vlaneseq
        %v761 = vshrl.u32 %v760, 7
        %v762 = vsub.s32 1, %v761
        %v763 = vrot.slane %v754, %v762
        %v766 = vmul.f32 %v739, %v759
        %v767 = vmul.f32 %v740, %v763
        %v768 = vmul.f32 %v741, %v759
        %v769 = vmul.f32 %v742, %v763
        %v770 = vmul.f32 %v743, %v759
        %v771 = vmul.f32 %v744, %v763
        %v772 = vmul.f32 %v745, %v759
        %v773 = vmul.f32 %v746, %v763
        %v774 = vmul.f32 %v747, %v759
        %v775 = vmul.f32 %v748, %v763
        %v776 = vmul.f32 %v749, %v759
        %v777 = vmul.f32 %v750, %v763
        %v778 = vmul.f32 %v751, %v759
        %v779 = vmul.f32 %v752, %v763
        %v780 = vadd.f32 %v725, %v766
        %v781 = vadd.f32 %v726, %v767
        %v782 = vadd.f32 %v727, %v768
        %v783 = vadd.f32 %v728, %v769
        %v784 = vadd.f32 %v729, %v770
        %v785 = vadd.f32 %v730, %v771
        %v786 = vadd.f32 %v731, %v772
        %v787 = vadd.f32 %v732, %v773
        %v788 = vadd.f32 %v733, %v774
        %v789 = vadd.f32 %v734, %v775
        %v790 = vadd.f32 %v735, %v776
        %v791 = vadd.f32 %v736, %v777
        %v792 = vadd.f32 %v737, %v778
        %v793 = vadd.f32 %v738, %v779
        %v794 = vld [vmem:[%s469] sm:$0xfe]
        %v795 = vld [vmem:[%s469 + $0x8] sm:$0xfe]
        %v796 = vld [vmem:[%s469 + $0x40] sm:$0xfe]
        %v797 = vld [vmem:[%s469 + $0x48] sm:$0xfe]
        %v798 = vld [vmem:[%s469 + $0x80] sm:$0xfe]
        %v799 = vld [vmem:[%s469 + $0x88] sm:$0xfe]
        %v800 = vld [vmem:[%s469 + $0xc0] sm:$0xfe]
        %v801 = vld [vmem:[%s469 + $0xc8] sm:$0xfe]
        %v802 = vld [vmem:[%s469 + $0x100] sm:$0xfe]
        %v803 = vld [vmem:[%s469 + $0x108] sm:$0xfe]
        %v804 = vld [vmem:[%s469 + $0x140] sm:$0xfe]
        %v805 = vld [vmem:[%s469 + $0x148] sm:$0xfe]
        %v806 = vld [vmem:[%s469 + $0x180] sm:$0xfe]
        %v807 = vld [vmem:[%s469 + $0x188] sm:$0xfe]
        %s808 = scalar_lea.vmem [#allocation10], 2
        %v809 = vld [vmem:[%s808] ss:$8 sm:$0x3]
        %v811 = vlaneseq
        %v812 = vshrl.u32 %v811, 7
        %v813 = vsub.s32 0, %v812
        %v814 = vrot.slane %v809, %v813
        %v815 = vlaneseq
        %v816 = vshrl.u32 %v815, 7
        %v817 = vsub.s32 1, %v816
        %v818 = vrot.slane %v809, %v817
        %v821 = vmul.f32 %v794, %v814
        %v822 = vmul.f32 %v795, %v818
        %v823 = vmul.f32 %v796, %v814
        %v824 = vmul.f32 %v797, %v818
        %v825 = vmul.f32 %v798, %v814
        %v826 = vmul.f32 %v799, %v818
        %v827 = vmul.f32 %v800, %v814
        %v828 = vmul.f32 %v801, %v818
        %v829 = vmul.f32 %v802, %v814
        %v830 = vmul.f32 %v803, %v818
        %v831 = vmul.f32 %v804, %v814
        %v832 = vmul.f32 %v805, %v818
        %v833 = vmul.f32 %v806, %v814
        %v834 = vmul.f32 %v807, %v818
        %v849 = vrot.slane %v821, 1
        %v850 = vrot.slane %v822, 1
        %v851 = vrot.slane %v823, 1
        %v852 = vrot.slane %v824, 1
        %v853 = vrot.slane %v825, 1
        %v854 = vrot.slane %v826, 1
        %v855 = vrot.slane %v827, 1
        %v856 = vrot.slane %v828, 1
        %v857 = vrot.slane %v829, 1
        %v858 = vrot.slane %v830, 1
        %v859 = vrot.slane %v831, 1
        %v860 = vrot.slane %v832, 1
        %v861 = vrot.slane %v833, 1
        %v862 = vrot.slane %v834, 1
        %v877 = vadd.f32 %v780, %v849
        %v878 = vadd.f32 %v781, %v850
        %v879 = vadd.f32 %v782, %v851
        %v880 = vadd.f32 %v783, %v852
        %v881 = vadd.f32 %v784, %v853
        %v882 = vadd.f32 %v785, %v854
        %v883 = vadd.f32 %v786, %v855
        %v884 = vadd.f32 %v787, %v856
        %v885 = vadd.f32 %v788, %v857
        %v886 = vadd.f32 %v789, %v858
        %v887 = vadd.f32 %v790, %v859
        %v888 = vadd.f32 %v791, %v860
        %v889 = vadd.f32 %v792, %v861
        %v890 = vadd.f32 %v793, %v862
        %s891 = scalar_lea.vmem %s469, 32 [#allocation7]
        %v892 = vld [vmem:[%s891] sm:$0x7f]
        %v893 = vld [vmem:[%s891 + $0x8] sm:$0x7f]
        %v894 = vld [vmem:[%s891 + $0x40] sm:$0x7f]
        %v895 = vld [vmem:[%s891 + $0x48] sm:$0x7f]
        %v896 = vld [vmem:[%s891 + $0x80] sm:$0x7f]
        %v897 = vld [vmem:[%s891 + $0x88] sm:$0x7f]
        %v898 = vld [vmem:[%s891 + $0xc0] sm:$0x7f]
        %v899 = vld [vmem:[%s891 + $0xc8] sm:$0x7f]
        %v900 = vld [vmem:[%s891 + $0x100] sm:$0x7f]
        %v901 = vld [vmem:[%s891 + $0x108] sm:$0x7f]
        %v902 = vld [vmem:[%s891 + $0x140] sm:$0x7f]
        %v903 = vld [vmem:[%s891 + $0x148] sm:$0x7f]
        %v904 = vld [vmem:[%s891 + $0x180] sm:$0x7f]
        %v905 = vld [vmem:[%s891 + $0x188] sm:$0x7f]
        %s906 = scalar_lea.vmem [#allocation10], 3
        %v907 = vld [vmem:[%s906] ss:$8 sm:$0x3]
        %v909 = vlaneseq
        %v910 = vshrl.u32 %v909, 7
        %v911 = vsub.s32 0, %v910
        %v912 = vrot.slane %v907, %v911
        %v913 = vlaneseq
        %v914 = vshrl.u32 %v913, 7
        %v915 = vsub.s32 1, %v914
        %v916 = vrot.slane %v907, %v915
        %v919 = vmul.f32 %v892, %v912
        %v920 = vmul.f32 %v893, %v916
        %v921 = vmul.f32 %v894, %v912
        %v922 = vmul.f32 %v895, %v916
        %v923 = vmul.f32 %v896, %v912
        %v924 = vmul.f32 %v897, %v916
        %v925 = vmul.f32 %v898, %v912
        %v926 = vmul.f32 %v899, %v916
        %v927 = vmul.f32 %v900, %v912
        %v928 = vmul.f32 %v901, %v916
        %v929 = vmul.f32 %v902, %v912
        %v930 = vmul.f32 %v903, %v916
        %v931 = vmul.f32 %v904, %v912
        %v932 = vmul.f32 %v905, %v916
        %v933 = vadd.f32 %v877, %v919
        %v934 = vadd.f32 %v878, %v920
        %v935 = vadd.f32 %v879, %v921
        %v936 = vadd.f32 %v880, %v922
        %v937 = vadd.f32 %v881, %v923
        %v938 = vadd.f32 %v882, %v924
        %v939 = vadd.f32 %v883, %v925
        %v940 = vadd.f32 %v884, %v926
        %v941 = vadd.f32 %v885, %v927
        %v942 = vadd.f32 %v886, %v928
        %v943 = vadd.f32 %v887, %v929
        %v944 = vadd.f32 %v888, %v930
        %v945 = vadd.f32 %v889, %v931
        %v946 = vadd.f32 %v890, %v932
        %s947 = scalar_lea.vmem %s476, 32 [#allocation8]
        %v948 = vld [vmem:[%s947] sm:$0x7f]
        %v949 = vld [vmem:[%s947 + $0x8] sm:$0x7f]
        %v950 = vld [vmem:[%s947 + $0x40] sm:$0x7f]
        %v951 = vld [vmem:[%s947 + $0x48] sm:$0x7f]
        %v952 = vld [vmem:[%s947 + $0x80] sm:$0x7f]
        %v953 = vld [vmem:[%s947 + $0x88] sm:$0x7f]
        %v954 = vld [vmem:[%s947 + $0xc0] sm:$0x7f]
        %v955 = vld [vmem:[%s947 + $0xc8] sm:$0x7f]
        %v956 = vld [vmem:[%s947 + $0x100] sm:$0x7f]
        %v957 = vld [vmem:[%s947 + $0x108] sm:$0x7f]
        %v958 = vld [vmem:[%s947 + $0x140] sm:$0x7f]
        %v959 = vld [vmem:[%s947 + $0x148] sm:$0x7f]
        %v960 = vld [vmem:[%s947 + $0x180] sm:$0x7f]
        %v961 = vld [vmem:[%s947 + $0x188] sm:$0x7f]
        %s962 = scalar_lea.vmem [#allocation10], 4
        %v963 = vld [vmem:[%s962] ss:$8 sm:$0x3]
        %v965 = vlaneseq
        %v966 = vshrl.u32 %v965, 7
        %v967 = vsub.s32 0, %v966
        %v968 = vrot.slane %v963, %v967
        %v969 = vlaneseq
        %v970 = vshrl.u32 %v969, 7
        %v971 = vsub.s32 1, %v970
        %v972 = vrot.slane %v963, %v971
        %v975 = vmul.f32 %v948, %v968
        %v976 = vmul.f32 %v949, %v972
        %v977 = vmul.f32 %v950, %v968
        %v978 = vmul.f32 %v951, %v972
        %v979 = vmul.f32 %v952, %v968
        %v980 = vmul.f32 %v953, %v972
        %v981 = vmul.f32 %v954, %v968
        %v982 = vmul.f32 %v955, %v972
        %v983 = vmul.f32 %v956, %v968
        %v984 = vmul.f32 %v957, %v972
        %v985 = vmul.f32 %v958, %v968
        %v986 = vmul.f32 %v959, %v972
        %v987 = vmul.f32 %v960, %v968
        %v988 = vmul.f32 %v961, %v972
        %v989 = vadd.f32 %v933, %v975
        %v990 = vadd.f32 %v934, %v976
        %v991 = vadd.f32 %v935, %v977
        %v992 = vadd.f32 %v936, %v978
        %v993 = vadd.f32 %v937, %v979
        %v994 = vadd.f32 %v938, %v980
        %v995 = vadd.f32 %v939, %v981
        %v996 = vadd.f32 %v940, %v982
        %v997 = vadd.f32 %v941, %v983
        %v998 = vadd.f32 %v942, %v984
        %v999 = vadd.f32 %v943, %v985
        %v1000 = vadd.f32 %v944, %v986
        %v1001 = vadd.f32 %v945, %v987
        %v1002 = vadd.f32 %v946, %v988
        %v1003 = vld [vmem:[%s891] sm:$0xfe]
        %v1004 = vld [vmem:[%s891 + $0x8] sm:$0xfe]
        %v1005 = vld [vmem:[%s891 + $0x40] sm:$0xfe]
        %v1006 = vld [vmem:[%s891 + $0x48] sm:$0xfe]
        %v1007 = vld [vmem:[%s891 + $0x80] sm:$0xfe]
        %v1008 = vld [vmem:[%s891 + $0x88] sm:$0xfe]
        %v1009 = vld [vmem:[%s891 + $0xc0] sm:$0xfe]
        %v1010 = vld [vmem:[%s891 + $0xc8] sm:$0xfe]
        %v1011 = vld [vmem:[%s891 + $0x100] sm:$0xfe]
        %v1012 = vld [vmem:[%s891 + $0x108] sm:$0xfe]
        %v1013 = vld [vmem:[%s891 + $0x140] sm:$0xfe]
        %v1014 = vld [vmem:[%s891 + $0x148] sm:$0xfe]
        %v1015 = vld [vmem:[%s891 + $0x180] sm:$0xfe]
        %v1016 = vld [vmem:[%s891 + $0x188] sm:$0xfe]
        %s1017 = scalar_lea.vmem [#allocation10], 5
        %v1018 = vld [vmem:[%s1017] ss:$8 sm:$0x3]
        %v1020 = vlaneseq
        %v1021 = vshrl.u32 %v1020, 7
        %v1022 = vsub.s32 0, %v1021
        %v1023 = vrot.slane %v1018, %v1022
        %v1024 = vlaneseq
        %v1025 = vshrl.u32 %v1024, 7
        %v1026 = vsub.s32 1, %v1025
        %v1027 = vrot.slane %v1018, %v1026
        %v1030 = vmul.f32 %v1003, %v1023
        %v1031 = vmul.f32 %v1004, %v1027
        %v1032 = vmul.f32 %v1005, %v1023
        %v1033 = vmul.f32 %v1006, %v1027
        %v1034 = vmul.f32 %v1007, %v1023
        %v1035 = vmul.f32 %v1008, %v1027
        %v1036 = vmul.f32 %v1009, %v1023
        %v1037 = vmul.f32 %v1010, %v1027
        %v1038 = vmul.f32 %v1011, %v1023
        %v1039 = vmul.f32 %v1012, %v1027
        %v1040 = vmul.f32 %v1013, %v1023
        %v1041 = vmul.f32 %v1014, %v1027
        %v1042 = vmul.f32 %v1015, %v1023
        %v1043 = vmul.f32 %v1016, %v1027
        %v1058 = vrot.slane %v1030, 1
        %v1059 = vrot.slane %v1031, 1
        %v1060 = vrot.slane %v1032, 1
        %v1061 = vrot.slane %v1033, 1
        %v1062 = vrot.slane %v1034, 1
        %v1063 = vrot.slane %v1035, 1
        %v1064 = vrot.slane %v1036, 1
        %v1065 = vrot.slane %v1037, 1
        %v1066 = vrot.slane %v1038, 1
        %v1067 = vrot.slane %v1039, 1
        %v1068 = vrot.slane %v1040, 1
        %v1069 = vrot.slane %v1041, 1
        %v1070 = vrot.slane %v1042, 1
        %v1071 = vrot.slane %v1043, 1
        %v1086 = vadd.f32 %v989, %v1058
        %v1087 = vadd.f32 %v990, %v1059
        %v1088 = vadd.f32 %v991, %v1060
        %v1089 = vadd.f32 %v992, %v1061
        %v1090 = vadd.f32 %v993, %v1062
        %v1091 = vadd.f32 %v994, %v1063
        %v1092 = vadd.f32 %v995, %v1064
        %v1093 = vadd.f32 %v996, %v1065
        %v1094 = vadd.f32 %v997, %v1066
        %v1095 = vadd.f32 %v998, %v1067
        %v1096 = vadd.f32 %v999, %v1068
        %v1097 = vadd.f32 %v1000, %v1069
        %v1098 = vadd.f32 %v1001, %v1070
        %v1099 = vadd.f32 %v1002, %v1071
        %s1100 = scalar_lea.vmem %s469, 64 [#allocation7]
        %v1101 = vld [vmem:[%s1100] sm:$0x7f]
        %v1102 = vld [vmem:[%s1100 + $0x8] sm:$0x7f]
        %v1103 = vld [vmem:[%s1100 + $0x40] sm:$0x7f]
        %v1104 = vld [vmem:[%s1100 + $0x48] sm:$0x7f]
        %v1105 = vld [vmem:[%s1100 + $0x80] sm:$0x7f]
        %v1106 = vld [vmem:[%s1100 + $0x88] sm:$0x7f]
        %v1107 = vld [vmem:[%s1100 + $0xc0] sm:$0x7f]
        %v1108 = vld [vmem:[%s1100 + $0xc8] sm:$0x7f]
        %v1109 = vld [vmem:[%s1100 + $0x100] sm:$0x7f]
        %v1110 = vld [vmem:[%s1100 + $0x108] sm:$0x7f]
        %v1111 = vld [vmem:[%s1100 + $0x140] sm:$0x7f]
        %v1112 = vld [vmem:[%s1100 + $0x148] sm:$0x7f]
        %v1113 = vld [vmem:[%s1100 + $0x180] sm:$0x7f]
        %v1114 = vld [vmem:[%s1100 + $0x188] sm:$0x7f]
        %s1115 = scalar_lea.vmem [#allocation10], 6
        %v1116 = vld [vmem:[%s1115] ss:$8 sm:$0x3]
        %v1118 = vlaneseq
        %v1119 = vshrl.u32 %v1118, 7
        %v1120 = vsub.s32 0, %v1119
        %v1121 = vrot.slane %v1116, %v1120
        %v1122 = vlaneseq
        %v1123 = vshrl.u32 %v1122, 7
        %v1124 = vsub.s32 1, %v1123
        %v1125 = vrot.slane %v1116, %v1124
        %v1128 = vmul.f32 %v1101, %v1121
        %v1129 = vmul.f32 %v1102, %v1125
        %v1130 = vmul.f32 %v1103, %v1121
        %v1131 = vmul.f32 %v1104, %v1125
        %v1132 = vmul.f32 %v1105, %v1121
        %v1133 = vmul.f32 %v1106, %v1125
        %v1134 = vmul.f32 %v1107, %v1121
        %v1135 = vmul.f32 %v1108, %v1125
        %v1136 = vmul.f32 %v1109, %v1121
        %v1137 = vmul.f32 %v1110, %v1125
        %v1138 = vmul.f32 %v1111, %v1121
        %v1139 = vmul.f32 %v1112, %v1125
        %v1140 = vmul.f32 %v1113, %v1121
        %v1141 = vmul.f32 %v1114, %v1125
        %v1142 = vadd.f32 %v1086, %v1128
        %v1143 = vadd.f32 %v1087, %v1129
        %v1144 = vadd.f32 %v1088, %v1130
        %v1145 = vadd.f32 %v1089, %v1131
        %v1146 = vadd.f32 %v1090, %v1132
        %v1147 = vadd.f32 %v1091, %v1133
        %v1148 = vadd.f32 %v1092, %v1134
        %v1149 = vadd.f32 %v1093, %v1135
        %v1150 = vadd.f32 %v1094, %v1136
        %v1151 = vadd.f32 %v1095, %v1137
        %v1152 = vadd.f32 %v1096, %v1138
        %v1153 = vadd.f32 %v1097, %v1139
        %v1154 = vadd.f32 %v1098, %v1140
        %v1155 = vadd.f32 %v1099, %v1141
        %s1156 = scalar_lea.vmem %s476, 64 [#allocation8]
        %v1157 = vld [vmem:[%s1156] sm:$0x7f]
        %v1158 = vld [vmem:[%s1156 + $0x8] sm:$0x7f]
        %v1159 = vld [vmem:[%s1156 + $0x40] sm:$0x7f]
        %v1160 = vld [vmem:[%s1156 + $0x48] sm:$0x7f]
        %v1161 = vld [vmem:[%s1156 + $0x80] sm:$0x7f]
        %v1162 = vld [vmem:[%s1156 + $0x88] sm:$0x7f]
        %v1163 = vld [vmem:[%s1156 + $0xc0] sm:$0x7f]
        %v1164 = vld [vmem:[%s1156 + $0xc8] sm:$0x7f]
        %v1165 = vld [vmem:[%s1156 + $0x100] sm:$0x7f]
        %v1166 = vld [vmem:[%s1156 + $0x108] sm:$0x7f]
        %v1167 = vld [vmem:[%s1156 + $0x140] sm:$0x7f]
        %v1168 = vld [vmem:[%s1156 + $0x148] sm:$0x7f]
        %v1169 = vld [vmem:[%s1156 + $0x180] sm:$0x7f]
        %v1170 = vld [vmem:[%s1156 + $0x188] sm:$0x7f]
        %s1171 = scalar_lea.vmem [#allocation10], 7
        %v1172 = vld [vmem:[%s1171] ss:$8 sm:$0x3]
        %v1174 = vlaneseq
        %v1175 = vshrl.u32 %v1174, 7
        %v1176 = vsub.s32 0, %v1175
        %v1177 = vrot.slane %v1172, %v1176
        %v1178 = vlaneseq
        %v1179 = vshrl.u32 %v1178, 7
        %v1180 = vsub.s32 1, %v1179
        %v1181 = vrot.slane %v1172, %v1180
        %v1184 = vmul.f32 %v1157, %v1177
        %v1185 = vmul.f32 %v1158, %v1181
        %v1186 = vmul.f32 %v1159, %v1177
        %v1187 = vmul.f32 %v1160, %v1181
        %v1188 = vmul.f32 %v1161, %v1177
        %v1189 = vmul.f32 %v1162, %v1181
        %v1190 = vmul.f32 %v1163, %v1177
        %v1191 = vmul.f32 %v1164, %v1181
        %v1192 = vmul.f32 %v1165, %v1177
        %v1193 = vmul.f32 %v1166, %v1181
        %v1194 = vmul.f32 %v1167, %v1177
        %v1195 = vmul.f32 %v1168, %v1181
        %v1196 = vmul.f32 %v1169, %v1177
        %v1197 = vmul.f32 %v1170, %v1181
        %v1198 = vadd.f32 %v1142, %v1184
        %v1199 = vadd.f32 %v1143, %v1185
        %v1200 = vadd.f32 %v1144, %v1186
        %v1201 = vadd.f32 %v1145, %v1187
        %v1202 = vadd.f32 %v1146, %v1188
        %v1203 = vadd.f32 %v1147, %v1189
        %v1204 = vadd.f32 %v1148, %v1190
        %v1205 = vadd.f32 %v1149, %v1191
        %v1206 = vadd.f32 %v1150, %v1192
        %v1207 = vadd.f32 %v1151, %v1193
        %v1208 = vadd.f32 %v1152, %v1194
        %v1209 = vadd.f32 %v1153, %v1195
        %v1210 = vadd.f32 %v1154, %v1196
        %v1211 = vadd.f32 %v1155, %v1197
        %v1212 = vld [vmem:[%s1100] sm:$0xfe]
        %v1213 = vld [vmem:[%s1100 + $0x8] sm:$0xfe]
        %v1214 = vld [vmem:[%s1100 + $0x40] sm:$0xfe]
        %v1215 = vld [vmem:[%s1100 + $0x48] sm:$0xfe]
        %v1216 = vld [vmem:[%s1100 + $0x80] sm:$0xfe]
        %v1217 = vld [vmem:[%s1100 + $0x88] sm:$0xfe]
        %v1218 = vld [vmem:[%s1100 + $0xc0] sm:$0xfe]
        %v1219 = vld [vmem:[%s1100 + $0xc8] sm:$0xfe]
        %v1220 = vld [vmem:[%s1100 + $0x100] sm:$0xfe]
        %v1221 = vld [vmem:[%s1100 + $0x108] sm:$0xfe]
        %v1222 = vld [vmem:[%s1100 + $0x140] sm:$0xfe]
        %v1223 = vld [vmem:[%s1100 + $0x148] sm:$0xfe]
        %v1224 = vld [vmem:[%s1100 + $0x180] sm:$0xfe]
        %v1225 = vld [vmem:[%s1100 + $0x188] sm:$0xfe]
        %s1226 = scalar_lea.vmem [#allocation10], 32
        %v1227 = vld [vmem:[%s1226] ss:$8 sm:$0x3]
        %v1229 = vlaneseq
        %v1230 = vshrl.u32 %v1229, 7
        %v1231 = vsub.s32 0, %v1230
        %v1232 = vrot.slane %v1227, %v1231
        %v1233 = vlaneseq
        %v1234 = vshrl.u32 %v1233, 7
        %v1235 = vsub.s32 1, %v1234
        %v1236 = vrot.slane %v1227, %v1235
        %v1239 = vmul.f32 %v1212, %v1232
        %v1240 = vmul.f32 %v1213, %v1236
        %v1241 = vmul.f32 %v1214, %v1232
        %v1242 = vmul.f32 %v1215, %v1236
        %v1243 = vmul.f32 %v1216, %v1232
        %v1244 = vmul.f32 %v1217, %v1236
        %v1245 = vmul.f32 %v1218, %v1232
        %v1246 = vmul.f32 %v1219, %v1236
        %v1247 = vmul.f32 %v1220, %v1232
        %v1248 = vmul.f32 %v1221, %v1236
        %v1249 = vmul.f32 %v1222, %v1232
        %v1250 = vmul.f32 %v1223, %v1236
        %v1251 = vmul.f32 %v1224, %v1232
        %v1252 = vmul.f32 %v1225, %v1236
        %v1267 = vrot.slane %v1239, 1
        %v1268 = vrot.slane %v1240, 1
        %v1269 = vrot.slane %v1241, 1
        %v1270 = vrot.slane %v1242, 1
        %v1271 = vrot.slane %v1243, 1
        %v1272 = vrot.slane %v1244, 1
        %v1273 = vrot.slane %v1245, 1
        %v1274 = vrot.slane %v1246, 1
        %v1275 = vrot.slane %v1247, 1
        %v1276 = vrot.slane %v1248, 1
        %v1277 = vrot.slane %v1249, 1
        %v1278 = vrot.slane %v1250, 1
        %v1279 = vrot.slane %v1251, 1
        %v1280 = vrot.slane %v1252, 1
        %v1295 = vadd.f32 %v1198, %v1267
        %v1296 = vadd.f32 %v1199, %v1268
        %v1297 = vadd.f32 %v1200, %v1269
        %v1298 = vadd.f32 %v1201, %v1270
        %v1299 = vadd.f32 %v1202, %v1271
        %v1300 = vadd.f32 %v1203, %v1272
        %v1301 = vadd.f32 %v1204, %v1273
        %v1302 = vadd.f32 %v1205, %v1274
        %v1303 = vadd.f32 %v1206, %v1275
        %v1304 = vadd.f32 %v1207, %v1276
        %v1305 = vadd.f32 %v1208, %v1277
        %v1306 = vadd.f32 %v1209, %v1278
        %v1307 = vadd.f32 %v1210, %v1279
        %v1308 = vadd.f32 %v1211, %v1280
        %1309 = vst [vmem:[%s508] sm:$0x7f] %v1295
        %1310 = vst [vmem:[%s508 + $0x8] sm:$0x7f] %v1296
        %1311 = vst [vmem:[%s508 + $0x20] sm:$0x7f] %v1297
        %1312 = vst [vmem:[%s508 + $0x28] sm:$0x7f] %v1298
        %1313 = vst [vmem:[%s508 + $0x40] sm:$0x7f] %v1299
        %1314 = vst [vmem:[%s508 + $0x48] sm:$0x7f] %v1300
        %1315 = vst [vmem:[%s508 + $0x60] sm:$0x7f] %v1301
        %1316 = vst [vmem:[%s508 + $0x68] sm:$0x7f] %v1302
        %1317 = vst [vmem:[%s508 + $0x80] sm:$0x7f] %v1303
        %1318 = vst [vmem:[%s508 + $0x88] sm:$0x7f] %v1304
        %1319 = vst [vmem:[%s508 + $0xa0] sm:$0x7f] %v1305
        %1320 = vst [vmem:[%s508 + $0xa8] sm:$0x7f] %v1306
        %1321 = vst [vmem:[%s508 + $0xc0] sm:$0x7f] %v1307
        %1322 = vst [vmem:[%s508 + $0xc8] sm:$0x7f] %v1308
        %v1323 = vld [vmem:[%s469 + $0x10] sm:$0x7f]
        %v1324 = vld [vmem:[%s469 + $0x18] sm:$0x7f]
        %v1325 = vld [vmem:[%s469 + $0x50] sm:$0x7f]
        %v1326 = vld [vmem:[%s469 + $0x58] sm:$0x7f]
        %v1327 = vld [vmem:[%s469 + $0x90] sm:$0x7f]
        %v1328 = vld [vmem:[%s469 + $0x98] sm:$0x7f]
        %v1329 = vld [vmem:[%s469 + $0xd0] sm:$0x7f]
        %v1330 = vld [vmem:[%s469 + $0xd8] sm:$0x7f]
        %v1331 = vld [vmem:[%s469 + $0x110] sm:$0x7f]
        %v1332 = vld [vmem:[%s469 + $0x118] sm:$0x7f]
        %v1333 = vld [vmem:[%s469 + $0x150] sm:$0x7f]
        %v1334 = vld [vmem:[%s469 + $0x158] sm:$0x7f]
        %v1335 = vld [vmem:[%s469 + $0x190] sm:$0x7f]
        %v1336 = vld [vmem:[%s469 + $0x198] sm:$0x7f]
        %s1337 = scalar_lea.vmem [#allocation10], 16
        %v1338 = vld [vmem:[%s1337] ss:$8 sm:$0x3]
        %v1340 = vlaneseq
        %v1341 = vshrl.u32 %v1340, 7
        %v1342 = vsub.s32 0, %v1341
        %v1343 = vrot.slane %v1338, %v1342
        %v1344 = vlaneseq
        %v1345 = vshrl.u32 %v1344, 7
        %v1346 = vsub.s32 1, %v1345
        %v1347 = vrot.slane %v1338, %v1346
        %v1350 = vmul.f32 %v1323, %v1343
        %v1351 = vmul.f32 %v1324, %v1347
        %v1352 = vmul.f32 %v1325, %v1343
        %v1353 = vmul.f32 %v1326, %v1347
        %v1354 = vmul.f32 %v1327, %v1343
        %v1355 = vmul.f32 %v1328, %v1347
        %v1356 = vmul.f32 %v1329, %v1343
        %v1357 = vmul.f32 %v1330, %v1347
        %v1358 = vmul.f32 %v1331, %v1343
        %v1359 = vmul.f32 %v1332, %v1347
        %v1360 = vmul.f32 %v1333, %v1343
        %v1361 = vmul.f32 %v1334, %v1347
        %v1362 = vmul.f32 %v1335, %v1343
        %v1363 = vmul.f32 %v1336, %v1347
        %v1364 = vadd.f32 %v1350, 0.0
        %v1365 = vadd.f32 %v1351, 0.0
        %v1366 = vadd.f32 %v1352, 0.0
        %v1367 = vadd.f32 %v1353, 0.0
        %v1368 = vadd.f32 %v1354, 0.0
        %v1369 = vadd.f32 %v1355, 0.0
        %v1370 = vadd.f32 %v1356, 0.0
        %v1371 = vadd.f32 %v1357, 0.0
        %v1372 = vadd.f32 %v1358, 0.0
        %v1373 = vadd.f32 %v1359, 0.0
        %v1374 = vadd.f32 %v1360, 0.0
        %v1375 = vadd.f32 %v1361, 0.0
        %v1376 = vadd.f32 %v1362, 0.0
        %v1377 = vadd.f32 %v1363, 0.0
        %v1378 = vld [vmem:[%s476 + $0x10] sm:$0x7f]
        %v1379 = vld [vmem:[%s476 + $0x18] sm:$0x7f]
        %v1380 = vld [vmem:[%s476 + $0x50] sm:$0x7f]
        %v1381 = vld [vmem:[%s476 + $0x58] sm:$0x7f]
        %v1382 = vld [vmem:[%s476 + $0x90] sm:$0x7f]
        %v1383 = vld [vmem:[%s476 + $0x98] sm:$0x7f]
        %v1384 = vld [vmem:[%s476 + $0xd0] sm:$0x7f]
        %v1385 = vld [vmem:[%s476 + $0xd8] sm:$0x7f]
        %v1386 = vld [vmem:[%s476 + $0x110] sm:$0x7f]
        %v1387 = vld [vmem:[%s476 + $0x118] sm:$0x7f]
        %v1388 = vld [vmem:[%s476 + $0x150] sm:$0x7f]
        %v1389 = vld [vmem:[%s476 + $0x158] sm:$0x7f]
        %v1390 = vld [vmem:[%s476 + $0x190] sm:$0x7f]
        %v1391 = vld [vmem:[%s476 + $0x198] sm:$0x7f]
        %s1392 = scalar_lea.vmem [#allocation10], 17
        %v1393 = vld [vmem:[%s1392] ss:$8 sm:$0x3]
        %v1395 = vlaneseq
        %v1396 = vshrl.u32 %v1395, 7
        %v1397 = vsub.s32 0, %v1396
        %v1398 = vrot.slane %v1393, %v1397
        %v1399 = vlaneseq
        %v1400 = vshrl.u32 %v1399, 7
        %v1401 = vsub.s32 1, %v1400
        %v1402 = vrot.slane %v1393, %v1401
        %v1405 = vmul.f32 %v1378, %v1398
        %v1406 = vmul.f32 %v1379, %v1402
        %v1407 = vmul.f32 %v1380, %v1398
        %v1408 = vmul.f32 %v1381, %v1402
        %v1409 = vmul.f32 %v1382, %v1398
        %v1410 = vmul.f32 %v1383, %v1402
        %v1411 = vmul.f32 %v1384, %v1398
        %v1412 = vmul.f32 %v1385, %v1402
        %v1413 = vmul.f32 %v1386, %v1398
        %v1414 = vmul.f32 %v1387, %v1402
        %v1415 = vmul.f32 %v1388, %v1398
        %v1416 = vmul.f32 %v1389, %v1402
        %v1417 = vmul.f32 %v1390, %v1398
        %v1418 = vmul.f32 %v1391, %v1402
        %v1419 = vadd.f32 %v1364, %v1405
        %v1420 = vadd.f32 %v1365, %v1406
        %v1421 = vadd.f32 %v1366, %v1407
        %v1422 = vadd.f32 %v1367, %v1408
        %v1423 = vadd.f32 %v1368, %v1409
        %v1424 = vadd.f32 %v1369, %v1410
        %v1425 = vadd.f32 %v1370, %v1411
        %v1426 = vadd.f32 %v1371, %v1412
        %v1427 = vadd.f32 %v1372, %v1413
        %v1428 = vadd.f32 %v1373, %v1414
        %v1429 = vadd.f32 %v1374, %v1415
        %v1430 = vadd.f32 %v1375, %v1416
        %v1431 = vadd.f32 %v1376, %v1417
        %v1432 = vadd.f32 %v1377, %v1418
        %v1433 = vld [vmem:[%s469 + $0x10] sm:$0xfe]
        %v1434 = vld [vmem:[%s469 + $0x18] sm:$0xfe]
        %v1435 = vld [vmem:[%s469 + $0x50] sm:$0xfe]
        %v1436 = vld [vmem:[%s469 + $0x58] sm:$0xfe]
        %v1437 = vld [vmem:[%s469 + $0x90] sm:$0xfe]
        %v1438 = vld [vmem:[%s469 + $0x98] sm:$0xfe]
        %v1439 = vld [vmem:[%s469 + $0xd0] sm:$0xfe]
        %v1440 = vld [vmem:[%s469 + $0xd8] sm:$0xfe]
        %v1441 = vld [vmem:[%s469 + $0x110] sm:$0xfe]
        %v1442 = vld [vmem:[%s469 + $0x118] sm:$0xfe]
        %v1443 = vld [vmem:[%s469 + $0x150] sm:$0xfe]
        %v1444 = vld [vmem:[%s469 + $0x158] sm:$0xfe]
        %v1445 = vld [vmem:[%s469 + $0x190] sm:$0xfe]
        %v1446 = vld [vmem:[%s469 + $0x198] sm:$0xfe]
        %s1447 = scalar_lea.vmem [#allocation10], 18
        %v1448 = vld [vmem:[%s1447] ss:$8 sm:$0x3]
        %v1450 = vlaneseq
        %v1451 = vshrl.u32 %v1450, 7
        %v1452 = vsub.s32 0, %v1451
        %v1453 = vrot.slane %v1448, %v1452
        %v1454 = vlaneseq
        %v1455 = vshrl.u32 %v1454, 7
        %v1456 = vsub.s32 1, %v1455
        %v1457 = vrot.slane %v1448, %v1456
        %v1460 = vmul.f32 %v1433, %v1453
        %v1461 = vmul.f32 %v1434, %v1457
        %v1462 = vmul.f32 %v1435, %v1453
        %v1463 = vmul.f32 %v1436, %v1457
        %v1464 = vmul.f32 %v1437, %v1453
        %v1465 = vmul.f32 %v1438, %v1457
        %v1466 = vmul.f32 %v1439, %v1453
        %v1467 = vmul.f32 %v1440, %v1457
        %v1468 = vmul.f32 %v1441, %v1453
        %v1469 = vmul.f32 %v1442, %v1457
        %v1470 = vmul.f32 %v1443, %v1453
        %v1471 = vmul.f32 %v1444, %v1457
        %v1472 = vmul.f32 %v1445, %v1453
        %v1473 = vmul.f32 %v1446, %v1457
        %v1488 = vrot.slane %v1460, 1
        %v1489 = vrot.slane %v1461, 1
        %v1490 = vrot.slane %v1462, 1
        %v1491 = vrot.slane %v1463, 1
        %v1492 = vrot.slane %v1464, 1
        %v1493 = vrot.slane %v1465, 1
        %v1494 = vrot.slane %v1466, 1
        %v1495 = vrot.slane %v1467, 1
        %v1496 = vrot.slane %v1468, 1
        %v1497 = vrot.slane %v1469, 1
        %v1498 = vrot.slane %v1470, 1
        %v1499 = vrot.slane %v1471, 1
        %v1500 = vrot.slane %v1472, 1
        %v1501 = vrot.slane %v1473, 1
        %v1516 = vadd.f32 %v1419, %v1488
        %v1517 = vadd.f32 %v1420, %v1489
        %v1518 = vadd.f32 %v1421, %v1490
        %v1519 = vadd.f32 %v1422, %v1491
        %v1520 = vadd.f32 %v1423, %v1492
        %v1521 = vadd.f32 %v1424, %v1493
        %v1522 = vadd.f32 %v1425, %v1494
        %v1523 = vadd.f32 %v1426, %v1495
        %v1524 = vadd.f32 %v1427, %v1496
        %v1525 = vadd.f32 %v1428, %v1497
        %v1526 = vadd.f32 %v1429, %v1498
        %v1527 = vadd.f32 %v1430, %v1499
        %v1528 = vadd.f32 %v1431, %v1500
        %v1529 = vadd.f32 %v1432, %v1501
        %v1530 = vld [vmem:[%s891 + $0x10] sm:$0x7f]
        %v1531 = vld [vmem:[%s891 + $0x18] sm:$0x7f]
        %v1532 = vld [vmem:[%s891 + $0x50] sm:$0x7f]
        %v1533 = vld [vmem:[%s891 + $0x58] sm:$0x7f]
        %v1534 = vld [vmem:[%s891 + $0x90] sm:$0x7f]
        %v1535 = vld [vmem:[%s891 + $0x98] sm:$0x7f]
        %v1536 = vld [vmem:[%s891 + $0xd0] sm:$0x7f]
        %v1537 = vld [vmem:[%s891 + $0xd8] sm:$0x7f]
        %v1538 = vld [vmem:[%s891 + $0x110] sm:$0x7f]
        %v1539 = vld [vmem:[%s891 + $0x118] sm:$0x7f]
        %v1540 = vld [vmem:[%s891 + $0x150] sm:$0x7f]
        %v1541 = vld [vmem:[%s891 + $0x158] sm:$0x7f]
        %v1542 = vld [vmem:[%s891 + $0x190] sm:$0x7f]
        %v1543 = vld [vmem:[%s891 + $0x198] sm:$0x7f]
        %s1544 = scalar_lea.vmem [#allocation10], 19
        %v1545 = vld [vmem:[%s1544] ss:$8 sm:$0x3]
        %v1547 = vlaneseq
        %v1548 = vshrl.u32 %v1547, 7
        %v1549 = vsub.s32 0, %v1548
        %v1550 = vrot.slane %v1545, %v1549
        %v1551 = vlaneseq
        %v1552 = vshrl.u32 %v1551, 7
        %v1553 = vsub.s32 1, %v1552
        %v1554 = vrot.slane %v1545, %v1553
        %v1557 = vmul.f32 %v1530, %v1550
        %v1558 = vmul.f32 %v1531, %v1554
        %v1559 = vmul.f32 %v1532, %v1550
        %v1560 = vmul.f32 %v1533, %v1554
        %v1561 = vmul.f32 %v1534, %v1550
        %v1562 = vmul.f32 %v1535, %v1554
        %v1563 = vmul.f32 %v1536, %v1550
        %v1564 = vmul.f32 %v1537, %v1554
        %v1565 = vmul.f32 %v1538, %v1550
        %v1566 = vmul.f32 %v1539, %v1554
        %v1567 = vmul.f32 %v1540, %v1550
        %v1568 = vmul.f32 %v1541, %v1554
        %v1569 = vmul.f32 %v1542, %v1550
        %v1570 = vmul.f32 %v1543, %v1554
        %v1571 = vadd.f32 %v1516, %v1557
        %v1572 = vadd.f32 %v1517, %v1558
        %v1573 = vadd.f32 %v1518, %v1559
        %v1574 = vadd.f32 %v1519, %v1560
        %v1575 = vadd.f32 %v1520, %v1561
        %v1576 = vadd.f32 %v1521, %v1562
        %v1577 = vadd.f32 %v1522, %v1563
        %v1578 = vadd.f32 %v1523, %v1564
        %v1579 = vadd.f32 %v1524, %v1565
        %v1580 = vadd.f32 %v1525, %v1566
        %v1581 = vadd.f32 %v1526, %v1567
        %v1582 = vadd.f32 %v1527, %v1568
        %v1583 = vadd.f32 %v1528, %v1569
        %v1584 = vadd.f32 %v1529, %v1570
        %v1585 = vld [vmem:[%s947 + $0x10] sm:$0x7f]
        %v1586 = vld [vmem:[%s947 + $0x18] sm:$0x7f]
        %v1587 = vld [vmem:[%s947 + $0x50] sm:$0x7f]
        %v1588 = vld [vmem:[%s947 + $0x58] sm:$0x7f]
        %v1589 = vld [vmem:[%s947 + $0x90] sm:$0x7f]
        %v1590 = vld [vmem:[%s947 + $0x98] sm:$0x7f]
        %v1591 = vld [vmem:[%s947 + $0xd0] sm:$0x7f]
        %v1592 = vld [vmem:[%s947 + $0xd8] sm:$0x7f]
        %v1593 = vld [vmem:[%s947 + $0x110] sm:$0x7f]
        %v1594 = vld [vmem:[%s947 + $0x118] sm:$0x7f]
        %v1595 = vld [vmem:[%s947 + $0x150] sm:$0x7f]
        %v1596 = vld [vmem:[%s947 + $0x158] sm:$0x7f]
        %v1597 = vld [vmem:[%s947 + $0x190] sm:$0x7f]
        %v1598 = vld [vmem:[%s947 + $0x198] sm:$0x7f]
        %s1599 = scalar_lea.vmem [#allocation10], 20
        %v1600 = vld [vmem:[%s1599] ss:$8 sm:$0x3]
        %v1602 = vlaneseq
        %v1603 = vshrl.u32 %v1602, 7
        %v1604 = vsub.s32 0, %v1603
        %v1605 = vrot.slane %v1600, %v1604
        %v1606 = vlaneseq
        %v1607 = vshrl.u32 %v1606, 7
        %v1608 = vsub.s32 1, %v1607
        %v1609 = vrot.slane %v1600, %v1608
        %v1612 = vmul.f32 %v1585, %v1605
        %v1613 = vmul.f32 %v1586, %v1609
        %v1614 = vmul.f32 %v1587, %v1605
        %v1615 = vmul.f32 %v1588, %v1609
        %v1616 = vmul.f32 %v1589, %v1605
        %v1617 = vmul.f32 %v1590, %v1609
        %v1618 = vmul.f32 %v1591, %v1605
        %v1619 = vmul.f32 %v1592, %v1609
        %v1620 = vmul.f32 %v1593, %v1605
        %v1621 = vmul.f32 %v1594, %v1609
        %v1622 = vmul.f32 %v1595, %v1605
        %v1623 = vmul.f32 %v1596, %v1609
        %v1624 = vmul.f32 %v1597, %v1605
        %v1625 = vmul.f32 %v1598, %v1609
        %v1626 = vadd.f32 %v1571, %v1612
        %v1627 = vadd.f32 %v1572, %v1613
        %v1628 = vadd.f32 %v1573, %v1614
        %v1629 = vadd.f32 %v1574, %v1615
        %v1630 = vadd.f32 %v1575, %v1616
        %v1631 = vadd.f32 %v1576, %v1617
        %v1632 = vadd.f32 %v1577, %v1618
        %v1633 = vadd.f32 %v1578, %v1619
        %v1634 = vadd.f32 %v1579, %v1620
        %v1635 = vadd.f32 %v1580, %v1621
        %v1636 = vadd.f32 %v1581, %v1622
        %v1637 = vadd.f32 %v1582, %v1623
        %v1638 = vadd.f32 %v1583, %v1624
        %v1639 = vadd.f32 %v1584, %v1625
        %v1640 = vld [vmem:[%s891 + $0x10] sm:$0xfe]
        %v1641 = vld [vmem:[%s891 + $0x18] sm:$0xfe]
        %v1642 = vld [vmem:[%s891 + $0x50] sm:$0xfe]
        %v1643 = vld [vmem:[%s891 + $0x58] sm:$0xfe]
        %v1644 = vld [vmem:[%s891 + $0x90] sm:$0xfe]
        %v1645 = vld [vmem:[%s891 + $0x98] sm:$0xfe]
        %v1646 = vld [vmem:[%s891 + $0xd0] sm:$0xfe]
        %v1647 = vld [vmem:[%s891 + $0xd8] sm:$0xfe]
        %v1648 = vld [vmem:[%s891 + $0x110] sm:$0xfe]
        %v1649 = vld [vmem:[%s891 + $0x118] sm:$0xfe]
        %v1650 = vld [vmem:[%s891 + $0x150] sm:$0xfe]
        %v1651 = vld [vmem:[%s891 + $0x158] sm:$0xfe]
        %v1652 = vld [vmem:[%s891 + $0x190] sm:$0xfe]
        %v1653 = vld [vmem:[%s891 + $0x198] sm:$0xfe]
        %s1654 = scalar_lea.vmem [#allocation10], 21
        %v1655 = vld [vmem:[%s1654] ss:$8 sm:$0x3]
        %v1657 = vlaneseq
        %v1658 = vshrl.u32 %v1657, 7
        %v1659 = vsub.s32 0, %v1658
        %v1660 = vrot.slane %v1655, %v1659
        %v1661 = vlaneseq
        %v1662 = vshrl.u32 %v1661, 7
        %v1663 = vsub.s32 1, %v1662
        %v1664 = vrot.slane %v1655, %v1663
        %v1667 = vmul.f32 %v1640, %v1660
        %v1668 = vmul.f32 %v1641, %v1664
        %v1669 = vmul.f32 %v1642, %v1660
        %v1670 = vmul.f32 %v1643, %v1664
        %v1671 = vmul.f32 %v1644, %v1660
        %v1672 = vmul.f32 %v1645, %v1664
        %v1673 = vmul.f32 %v1646, %v1660
        %v1674 = vmul.f32 %v1647, %v1664
        %v1675 = vmul.f32 %v1648, %v1660
        %v1676 = vmul.f32 %v1649, %v1664
        %v1677 = vmul.f32 %v1650, %v1660
        %v1678 = vmul.f32 %v1651, %v1664
        %v1679 = vmul.f32 %v1652, %v1660
        %v1680 = vmul.f32 %v1653, %v1664
        %v1695 = vrot.slane %v1667, 1
        %v1696 = vrot.slane %v1668, 1
        %v1697 = vrot.slane %v1669, 1
        %v1698 = vrot.slane %v1670, 1
        %v1699 = vrot.slane %v1671, 1
        %v1700 = vrot.slane %v1672, 1
        %v1701 = vrot.slane %v1673, 1
        %v1702 = vrot.slane %v1674, 1
        %v1703 = vrot.slane %v1675, 1
        %v1704 = vrot.slane %v1676, 1
        %v1705 = vrot.slane %v1677, 1
        %v1706 = vrot.slane %v1678, 1
        %v1707 = vrot.slane %v1679, 1
        %v1708 = vrot.slane %v1680, 1
        %v1723 = vadd.f32 %v1626, %v1695
        %v1724 = vadd.f32 %v1627, %v1696
        %v1725 = vadd.f32 %v1628, %v1697
        %v1726 = vadd.f32 %v1629, %v1698
        %v1727 = vadd.f32 %v1630, %v1699
        %v1728 = vadd.f32 %v1631, %v1700
        %v1729 = vadd.f32 %v1632, %v1701
        %v1730 = vadd.f32 %v1633, %v1702
        %v1731 = vadd.f32 %v1634, %v1703
        %v1732 = vadd.f32 %v1635, %v1704
        %v1733 = vadd.f32 %v1636, %v1705
        %v1734 = vadd.f32 %v1637, %v1706
        %v1735 = vadd.f32 %v1638, %v1707
        %v1736 = vadd.f32 %v1639, %v1708
        %v1737 = vld [vmem:[%s1100 + $0x10] sm:$0x7f]
        %v1738 = vld [vmem:[%s1100 + $0x18] sm:$0x7f]
        %v1739 = vld [vmem:[%s1100 + $0x50] sm:$0x7f]
        %v1740 = vld [vmem:[%s1100 + $0x58] sm:$0x7f]
        %v1741 = vld [vmem:[%s1100 + $0x90] sm:$0x7f]
        %v1742 = vld [vmem:[%s1100 + $0x98] sm:$0x7f]
        %v1743 = vld [vmem:[%s1100 + $0xd0] sm:$0x7f]
        %v1744 = vld [vmem:[%s1100 + $0xd8] sm:$0x7f]
        %v1745 = vld [vmem:[%s1100 + $0x110] sm:$0x7f]
        %v1746 = vld [vmem:[%s1100 + $0x118] sm:$0x7f]
        %v1747 = vld [vmem:[%s1100 + $0x150] sm:$0x7f]
        %v1748 = vld [vmem:[%s1100 + $0x158] sm:$0x7f]
        %v1749 = vld [vmem:[%s1100 + $0x190] sm:$0x7f]
        %v1750 = vld [vmem:[%s1100 + $0x198] sm:$0x7f]
        %s1751 = scalar_lea.vmem [#allocation10], 22
        %v1752 = vld [vmem:[%s1751] ss:$8 sm:$0x3]
        %v1754 = vlaneseq
        %v1755 = vshrl.u32 %v1754, 7
        %v1756 = vsub.s32 0, %v1755
        %v1757 = vrot.slane %v1752, %v1756
        %v1758 = vlaneseq
        %v1759 = vshrl.u32 %v1758, 7
        %v1760 = vsub.s32 1, %v1759
        %v1761 = vrot.slane %v1752, %v1760
        %v1764 = vmul.f32 %v1737, %v1757
        %v1765 = vmul.f32 %v1738, %v1761
        %v1766 = vmul.f32 %v1739, %v1757
        %v1767 = vmul.f32 %v1740, %v1761
        %v1768 = vmul.f32 %v1741, %v1757
        %v1769 = vmul.f32 %v1742, %v1761
        %v1770 = vmul.f32 %v1743, %v1757
        %v1771 = vmul.f32 %v1744, %v1761
        %v1772 = vmul.f32 %v1745, %v1757
        %v1773 = vmul.f32 %v1746, %v1761
        %v1774 = vmul.f32 %v1747, %v1757
        %v1775 = vmul.f32 %v1748, %v1761
        %v1776 = vmul.f32 %v1749, %v1757
        %v1777 = vmul.f32 %v1750, %v1761
        %v1778 = vadd.f32 %v1723, %v1764
        %v1779 = vadd.f32 %v1724, %v1765
        %v1780 = vadd.f32 %v1725, %v1766
        %v1781 = vadd.f32 %v1726, %v1767
        %v1782 = vadd.f32 %v1727, %v1768
        %v1783 = vadd.f32 %v1728, %v1769
        %v1784 = vadd.f32 %v1729, %v1770
        %v1785 = vadd.f32 %v1730, %v1771
        %v1786 = vadd.f32 %v1731, %v1772
        %v1787 = vadd.f32 %v1732, %v1773
        %v1788 = vadd.f32 %v1733, %v1774
        %v1789 = vadd.f32 %v1734, %v1775
        %v1790 = vadd.f32 %v1735, %v1776
        %v1791 = vadd.f32 %v1736, %v1777
        %v1792 = vld [vmem:[%s1156 + $0x10] sm:$0x7f]
        %v1793 = vld [vmem:[%s1156 + $0x18] sm:$0x7f]
        %v1794 = vld [vmem:[%s1156 + $0x50] sm:$0x7f]
        %v1795 = vld [vmem:[%s1156 + $0x58] sm:$0x7f]
        %v1796 = vld [vmem:[%s1156 + $0x90] sm:$0x7f]
        %v1797 = vld [vmem:[%s1156 + $0x98] sm:$0x7f]
        %v1798 = vld [vmem:[%s1156 + $0xd0] sm:$0x7f]
        %v1799 = vld [vmem:[%s1156 + $0xd8] sm:$0x7f]
        %v1800 = vld [vmem:[%s1156 + $0x110] sm:$0x7f]
        %v1801 = vld [vmem:[%s1156 + $0x118] sm:$0x7f]
        %v1802 = vld [vmem:[%s1156 + $0x150] sm:$0x7f]
        %v1803 = vld [vmem:[%s1156 + $0x158] sm:$0x7f]
        %v1804 = vld [vmem:[%s1156 + $0x190] sm:$0x7f]
        %v1805 = vld [vmem:[%s1156 + $0x198] sm:$0x7f]
        %s1806 = scalar_lea.vmem [#allocation10], 23
        %v1807 = vld [vmem:[%s1806] ss:$8 sm:$0x3]
        %v1809 = vlaneseq
        %v1810 = vshrl.u32 %v1809, 7
        %v1811 = vsub.s32 0, %v1810
        %v1812 = vrot.slane %v1807, %v1811
        %v1813 = vlaneseq
        %v1814 = vshrl.u32 %v1813, 7
        %v1815 = vsub.s32 1, %v1814
        %v1816 = vrot.slane %v1807, %v1815
        %v1819 = vmul.f32 %v1792, %v1812
        %v1820 = vmul.f32 %v1793, %v1816
        %v1821 = vmul.f32 %v1794, %v1812
        %v1822 = vmul.f32 %v1795, %v1816
        %v1823 = vmul.f32 %v1796, %v1812
        %v1824 = vmul.f32 %v1797, %v1816
        %v1825 = vmul.f32 %v1798, %v1812
        %v1826 = vmul.f32 %v1799, %v1816
        %v1827 = vmul.f32 %v1800, %v1812
        %v1828 = vmul.f32 %v1801, %v1816
        %v1829 = vmul.f32 %v1802, %v1812
        %v1830 = vmul.f32 %v1803, %v1816
        %v1831 = vmul.f32 %v1804, %v1812
        %v1832 = vmul.f32 %v1805, %v1816
        %v1833 = vadd.f32 %v1778, %v1819
        %v1834 = vadd.f32 %v1779, %v1820
        %v1835 = vadd.f32 %v1780, %v1821
        %v1836 = vadd.f32 %v1781, %v1822
        %v1837 = vadd.f32 %v1782, %v1823
        %v1838 = vadd.f32 %v1783, %v1824
        %v1839 = vadd.f32 %v1784, %v1825
        %v1840 = vadd.f32 %v1785, %v1826
        %v1841 = vadd.f32 %v1786, %v1827
        %v1842 = vadd.f32 %v1787, %v1828
        %v1843 = vadd.f32 %v1788, %v1829
        %v1844 = vadd.f32 %v1789, %v1830
        %v1845 = vadd.f32 %v1790, %v1831
        %v1846 = vadd.f32 %v1791, %v1832
        %v1847 = vld [vmem:[%s1100 + $0x10] sm:$0xfe]
        %v1848 = vld [vmem:[%s1100 + $0x18] sm:$0xfe]
        %v1849 = vld [vmem:[%s1100 + $0x50] sm:$0xfe]
        %v1850 = vld [vmem:[%s1100 + $0x58] sm:$0xfe]
        %v1851 = vld [vmem:[%s1100 + $0x90] sm:$0xfe]
        %v1852 = vld [vmem:[%s1100 + $0x98] sm:$0xfe]
        %v1853 = vld [vmem:[%s1100 + $0xd0] sm:$0xfe]
        %v1854 = vld [vmem:[%s1100 + $0xd8] sm:$0xfe]
        %v1855 = vld [vmem:[%s1100 + $0x110] sm:$0xfe]
        %v1856 = vld [vmem:[%s1100 + $0x118] sm:$0xfe]
        %v1857 = vld [vmem:[%s1100 + $0x150] sm:$0xfe]
        %v1858 = vld [vmem:[%s1100 + $0x158] sm:$0xfe]
        %v1859 = vld [vmem:[%s1100 + $0x190] sm:$0xfe]
        %v1860 = vld [vmem:[%s1100 + $0x198] sm:$0xfe]
        %s1861 = scalar_lea.vmem [#allocation10], 48
        %v1862 = vld [vmem:[%s1861] ss:$8 sm:$0x3]
        %v1864 = vlaneseq
        %v1865 = vshrl.u32 %v1864, 7
        %v1866 = vsub.s32 0, %v1865
        %v1867 = vrot.slane %v1862, %v1866
        %v1868 = vlaneseq
        %v1869 = vshrl.u32 %v1868, 7
        %v1870 = vsub.s32 1, %v1869
        %v1871 = vrot.slane %v1862, %v1870
        %v1874 = vmul.f32 %v1847, %v1867
        %v1875 = vmul.f32 %v1848, %v1871
        %v1876 = vmul.f32 %v1849, %v1867
        %v1877 = vmul.f32 %v1850, %v1871
        %v1878 = vmul.f32 %v1851, %v1867
        %v1879 = vmul.f32 %v1852, %v1871
        %v1880 = vmul.f32 %v1853, %v1867
        %v1881 = vmul.f32 %v1854, %v1871
        %v1882 = vmul.f32 %v1855, %v1867
        %v1883 = vmul.f32 %v1856, %v1871
        %v1884 = vmul.f32 %v1857, %v1867
        %v1885 = vmul.f32 %v1858, %v1871
        %v1886 = vmul.f32 %v1859, %v1867
        %v1887 = vmul.f32 %v1860, %v1871
        %v1902 = vrot.slane %v1874, 1
        %v1903 = vrot.slane %v1875, 1
        %v1904 = vrot.slane %v1876, 1
        %v1905 = vrot.slane %v1877, 1
        %v1906 = vrot.slane %v1878, 1
        %v1907 = vrot.slane %v1879, 1
        %v1908 = vrot.slane %v1880, 1
        %v1909 = vrot.slane %v1881, 1
        %v1910 = vrot.slane %v1882, 1
        %v1911 = vrot.slane %v1883, 1
        %v1912 = vrot.slane %v1884, 1
        %v1913 = vrot.slane %v1885, 1
        %v1914 = vrot.slane %v1886, 1
        %v1915 = vrot.slane %v1887, 1
        %v1930 = vadd.f32 %v1833, %v1902
        %v1931 = vadd.f32 %v1834, %v1903
        %v1932 = vadd.f32 %v1835, %v1904
        %v1933 = vadd.f32 %v1836, %v1905
        %v1934 = vadd.f32 %v1837, %v1906
        %v1935 = vadd.f32 %v1838, %v1907
        %v1936 = vadd.f32 %v1839, %v1908
        %v1937 = vadd.f32 %v1840, %v1909
        %v1938 = vadd.f32 %v1841, %v1910
        %v1939 = vadd.f32 %v1842, %v1911
        %v1940 = vadd.f32 %v1843, %v1912
        %v1941 = vadd.f32 %v1844, %v1913
        %v1942 = vadd.f32 %v1845, %v1914
        %v1943 = vadd.f32 %v1846, %v1915
        %1944 = vst [vmem:[%s508 + $0x10] sm:$0x7f] %v1930
        %1945 = vst [vmem:[%s508 + $0x18] sm:$0x7f] %v1931
        %1946 = vst [vmem:[%s508 + $0x30] sm:$0x7f] %v1932
        %1947 = vst [vmem:[%s508 + $0x38] sm:$0x7f] %v1933
        %1948 = vst [vmem:[%s508 + $0x50] sm:$0x7f] %v1934
        %1949 = vst [vmem:[%s508 + $0x58] sm:$0x7f] %v1935
        %1950 = vst [vmem:[%s508 + $0x70] sm:$0x7f] %v1936
        %1951 = vst [vmem:[%s508 + $0x78] sm:$0x7f] %v1937
        %1952 = vst [vmem:[%s508 + $0x90] sm:$0x7f] %v1938
        %1953 = vst [vmem:[%s508 + $0x98] sm:$0x7f] %v1939
        %1954 = vst [vmem:[%s508 + $0xb0] sm:$0x7f] %v1940
        %1955 = vst [vmem:[%s508 + $0xb8] sm:$0x7f] %v1941
        %1956 = vst [vmem:[%s508 + $0xd0] sm:$0x7f] %v1942
        %1957 = vst [vmem:[%s508 + $0xd8] sm:$0x7f] %v1943
        %s1958 = sand.u32 %s103, 1
        %s1959 = sand.u32 %s103, 1
        %s1960 = smul.addr %s1959, 224
        %s1961 = scalar_lea.vmem [#allocation9], %s1960
        // Predicated region
        $region79: #{depthwise_conv3x3_s2_p1.2} parent=69 // pred_check
          %p1962 = pneg %p113
        $region80: #{depthwise_conv3x3_s2_p1.2} parent=69 // pred_check_branch
          %1964 = sbr.rel (%p1962) target = $region82
        $region81: #{depthwise_conv3x3_s2_p1.2} parent=69 // pred_region
          %s1965 = smul.u32 4, %s15
          %s1966 = smul.addr %s1965, 8
          %s1967 = scalar_lea.vmem %s3, %s1966
          // Predicated region
          $region83: #{depthwise_conv3x3_s2_p1.2} parent=81 // pred_check
            _
          $region84: #{depthwise_conv3x3_s2_p1.2} parent=81 // pred_check_branch
            %1969 = sbr.rel (0) target = $region86
          $region85: #{depthwise_conv3x3_s2_p1.2} parent=81 // pred_region
            // Predicated region
            $region87: #{depthwise_conv3x3_s2_p1.2} parent=85 // pred_check
              _
            $region88: #{depthwise_conv3x3_s2_p1.2} parent=85 // pred_check_branch
              %1971 = sbr.rel (0) target = $region90
            $region89: #{depthwise_conv3x3_s2_p1.2} parent=85 // pred_region
              loop: start=0, step=1, limit=1
              $region91: #{depthwise_conv3x3_s2_p1.2} parent=89 // loop_pre_header
                _
              $region92: #{depthwise_conv3x3_s2_p1.2} parent=89 // loop_header
                %s1973 = sphi 0, %s1977
                %p1974 = scmp.ge.s32.totalorder %s1973, 1
                %s1978 = sphi %s1961, %s1961
                %s1979 = sphi %s1967, %s1967
              $region93: #{depthwise_conv3x3_s2_p1.2} parent=89 // loop_header_branch
                %1976 = sbr.rel (%p1974) target = $region97
              $region94: #{depthwise_conv3x3_s2_p1.2} parent=89 // loop_body
                %v1980 = vld [vmem:[%s1978] sm:$0xff]
                %1981 = vst [vmem:[%s1979] sm:$0xff] %v1980
                %v1982 = vld [vmem:[%s1978 + $0x8] sm:$0xff]
                %1983 = vst [vmem:[%s1979 + $0x8] sm:$0xff] %v1982
                %v1984 = vld [vmem:[%s1978 + $0x10] sm:$0xff]
                %1985 = vst [vmem:[%s1979 + $0x10] sm:$0xff] %v1984
                %v1986 = vld [vmem:[%s1978 + $0x18] sm:$0xff]
                %1987 = vst [vmem:[%s1979 + $0x18] sm:$0xff] %v1986
                %v1988 = vld [vmem:[%s1978 + $0x20] sm:$0xff]
                %1989 = vst [vmem:[%s1979 + $0x40] sm:$0xff] %v1988
                %v1990 = vld [vmem:[%s1978 + $0x28] sm:$0xff]
                %1991 = vst [vmem:[%s1979 + $0x48] sm:$0xff] %v1990
                %v1992 = vld [vmem:[%s1978 + $0x30] sm:$0xff]
                %1993 = vst [vmem:[%s1979 + $0x50] sm:$0xff] %v1992
                %v1994 = vld [vmem:[%s1978 + $0x38] sm:$0xff]
                %1995 = vst [vmem:[%s1979 + $0x58] sm:$0xff] %v1994
                %v1996 = vld [vmem:[%s1978 + $0x40] sm:$0xff]
                %1997 = vst [vmem:[%s1979 + $0x80] sm:$0xff] %v1996
                %v1998 = vld [vmem:[%s1978 + $0x48] sm:$0xff]
                %1999 = vst [vmem:[%s1979 + $0x88] sm:$0xff] %v1998
                %v2000 = vld [vmem:[%s1978 + $0x50] sm:$0xff]
                %2001 = vst [vmem:[%s1979 + $0x90] sm:$0xff] %v2000
                %v2002 = vld [vmem:[%s1978 + $0x58] sm:$0xff]
                %2003 = vst [vmem:[%s1979 + $0x98] sm:$0xff] %v2002
                %v2004 = vld [vmem:[%s1978 + $0x60] sm:$0xff]
                %2005 = vst [vmem:[%s1979 + $0xc0] sm:$0xff] %v2004
                %v2006 = vld [vmem:[%s1978 + $0x68] sm:$0xff]
                %2007 = vst [vmem:[%s1979 + $0xc8] sm:$0xff] %v2006
                %v2008 = vld [vmem:[%s1978 + $0x70] sm:$0xff]
                %2009 = vst [vmem:[%s1979 + $0xd0] sm:$0xff] %v2008
                %v2010 = vld [vmem:[%s1978 + $0x78] sm:$0xff]
                %2011 = vst [vmem:[%s1979 + $0xd8] sm:$0xff] %v2010
                %v2012 = vld [vmem:[%s1978 + $0x80] sm:$0xff]
                %2013 = vst [vmem:[%s1979 + $0x100] sm:$0xff] %v2012
                %v2014 = vld [vmem:[%s1978 + $0x88] sm:$0xff]
                %2015 = vst [vmem:[%s1979 + $0x108] sm:$0xff] %v2014
                %v2016 = vld [vmem:[%s1978 + $0x90] sm:$0xff]
                %2017 = vst [vmem:[%s1979 + $0x110] sm:$0xff] %v2016
                %v2018 = vld [vmem:[%s1978 + $0x98] sm:$0xff]
                %2019 = vst [vmem:[%s1979 + $0x118] sm:$0xff] %v2018
                %v2020 = vld [vmem:[%s1978 + $0xa0] sm:$0xff]
                %2021 = vst [vmem:[%s1979 + $0x140] sm:$0xff] %v2020
                %v2022 = vld [vmem:[%s1978 + $0xa8] sm:$0xff]
                %2023 = vst [vmem:[%s1979 + $0x148] sm:$0xff] %v2022
                %v2024 = vld [vmem:[%s1978 + $0xb0] sm:$0xff]
                %2025 = vst [vmem:[%s1979 + $0x150] sm:$0xff] %v2024
                %v2026 = vld [vmem:[%s1978 + $0xb8] sm:$0xff]
                %2027 = vst [vmem:[%s1979 + $0x158] sm:$0xff] %v2026
                %v2028 = vld [vmem:[%s1978 + $0xc0] sm:$0xff]
                %2029 = vst [vmem:[%s1979 + $0x180] sm:$0xff] %v2028
                %v2030 = vld [vmem:[%s1978 + $0xc8] sm:$0xff]
                %2031 = vst [vmem:[%s1979 + $0x188] sm:$0xff] %v2030
                %v2032 = vld [vmem:[%s1978 + $0xd0] sm:$0xff]
                %2033 = vst [vmem:[%s1979 + $0x190] sm:$0xff] %v2032
                %v2034 = vld [vmem:[%s1978 + $0xd8] sm:$0xff]
                %2035 = vst [vmem:[%s1979 + $0x198] sm:$0xff] %v2034
              $region95: #{depthwise_conv3x3_s2_p1.2} parent=89 // loop_footer
                %s1977 = sadd.s32 1, %s1973
              $region96: #{depthwise_conv3x3_s2_p1.2} parent=89 // loop_footer_branch
                %1972 = sbr.rel target = $region92
              $region97: #{depthwise_conv3x3_s2_p1.2} parent=89 // loop_exit
                _
            $region90: #{depthwise_conv3x3_s2_p1.2} parent=85 // pred_fallthru
              _
            // Predicated region
            $region98: #{depthwise_conv3x3_s2_p1.2} parent=85 // pred_check
              _
            $region99: #{depthwise_conv3x3_s2_p1.2} parent=85 // pred_check_branch
              %2037 = sbr.rel target = $region101
            $region100: #{depthwise_conv3x3_s2_p1.2} parent=85 // pred_region
              _
            $region101: #{depthwise_conv3x3_s2_p1.2} parent=85 // pred_fallthru
              _
          $region86: #{depthwise_conv3x3_s2_p1.2} parent=81 // pred_fallthru
            _
          %2038 = vnop
        $region82: #{depthwise_conv3x3_s2_p1.2} parent=69 // pred_fallthru
          _
      $region70: #{depthwise_conv3x3_s2_p1.2} parent=5 // pred_fallthru
        _
      %p2039 = scmp.le.s32.totalorder 2, %s10
      // Predicated region
      $region102: #{depthwise_conv3x3_s2_p1.2} parent=5 // pred_check
        %p2040 = pneg %p2039
      $region103: #{depthwise_conv3x3_s2_p1.2} parent=5 // pred_check_branch
        %2042 = sbr.rel (%p2040) target = $region105
      $region104: #{depthwise_conv3x3_s2_p1.2} parent=5 // pred_region
        %s2043 = ssub.s32 %s10, 2
        // Predicated region
        $region106: #{depthwise_conv3x3_s2_p1.2} parent=104 // pred_check
          %p2044 = pneg %p119
        $region107: #{depthwise_conv3x3_s2_p1.2} parent=104 // pred_check_branch
          %2046 = sbr.rel (%p2044) target = $region109
        $region108: #{depthwise_conv3x3_s2_p1.2} parent=104 // pred_region
          %s2047 = sand.u32 %s104, 1
          %s2048 = sand.u32 %s104, 1
          %s2049 = smul.addr %s2048, 224
          %s2050 = scalar_lea.vmem [#allocation9], %s2049
        $region109: #{depthwise_conv3x3_s2_p1.2} parent=104 // pred_fallthru
          _
      $region105: #{depthwise_conv3x3_s2_p1.2} parent=5 // pred_fallthru
        _
    $region6: #{depthwise_conv3x3_s2_p1.2} parent=1 // loop_footer
      %s14 = sadd.s32 1, %s10
    $region7: #{depthwise_conv3x3_s2_p1.2} parent=1 // loop_footer_branch
      %9 = sbr.rel target = $region3
    $region8: #{depthwise_conv3x3_s2_p1.2} parent=1 // loop_exit
      _

</llo_original>
